<compile_context>
chip_gen: v7x
topology: tpu7x:2x2x1
jax: 0.10.0
libtpu: 0.0.40
codegen_flags: <defaults>
</compile_context>

<pallas_src>
import functools

import jax
import jax.numpy as jnp
from jax import lax
from jax.experimental import pallas as pl
from jax.experimental.pallas import tpu as pltpu

LEAK = 0.1
EPS = 1e-5


# --------------------------------------------------------------------------
# Pallas kernel: one residual repeat, one (batch, row-strip) tile per step.
# --------------------------------------------------------------------------
def _resblock_kernel(x_ref, xtop_ref, xbot_ref, w1_ref, b1_ref, w2s_ref, b2_ref,
                     o_ref, *, use_residual, w_real):
    # x_ref:    (1, TH, W, C)  bf16     xtop/xbot_ref: (1, 1, W, C) bf16
    # w1_ref:   (C, Cmid)      bf16     b1_ref: (1, Cmid) f32
    # w2s_ref:  (3, 3*Cmid, C) bf16     b2_ref: (1, C)    f32   (dw taps K-stacked)
    # o_ref:    (1, TH, W, C)  bf16
    _, TH, W, C = x_ref.shape
    Cmid = w1_ref.shape[1]
    h = pl.program_id(1)
    last = pl.num_programs(1) - 1

    w1 = w1_ref[...]

    def conv1(v):  # v: (rows, C) bf16 -> LeakyReLU(v @ w1 + b1) in f32
        z = jnp.dot(v, w1, preferred_element_type=jnp.float32) + b1_ref[...]
        return jnp.maximum(z, LEAK * z)

    # ---- 1x1 conv (+BN folded) + LeakyReLU ---------------------------------
    # Halo rows are handled by two tiny extra matmuls so the image-border strips
    # can zero them (they stand in for the 3x3 conv's zero padding) with a
    # scalar multiply on one row each -- no full-tile mask on interior strips.
    a_body = conv1(x_ref[...].reshape(TH * W, C))                  # (TH*W, Cmid)
    top_keep = jnp.where(h > 0, 1.0, 0.0)
    bot_keep = jnp.where(h < last, 1.0, 0.0)
    a_top = conv1(xtop_ref[...].reshape(W, C)) * top_keep          # (W, Cmid)
    a_bot = conv1(xbot_ref[...].reshape(W, C)) * bot_keep          # (W, Cmid)

    a_c = jnp.concatenate([a_top, a_body, a_bot], axis=0)          # ((TH+2)*W, Cmid)
    a_c = a_c.astype(jnp.bfloat16).reshape(TH + 2, W, Cmid)

    # ---- W-direction taps with zero edge columns ---------------------------
    # TODO(synk): build these via pltpu.roll(axis=1) + one-column mask (XLU
    # slot) once sublane rotation is confirmed on the target toolchain; the
    # slice+concat form below is the portable construction.
    zcol = jnp.zeros((TH + 2, 1, Cmid), a_c.dtype)
    a_m = jnp.concatenate([zcol, a_c[:, :W - 1, :]], axis=1)       # a[:, j-1]
    a_p = jnp.concatenate([a_c[:, 1:, :], zcol], axis=1)           # a[:, j+1]
    if w_real != W:
        # Static branch: only taken when the wrapper padded W.  Zero the padded
        # columns so they cannot leak into the last real column via the j+1 tap.
        col = lax.broadcasted_iota(jnp.int32, (1, W, 1), 1)
        a_p = a_p * (col < w_real - 1).astype(a_p.dtype)

    # K-stack the three W taps along the contraction (lane) axis.
    taps = jnp.concatenate([a_m, a_c, a_p], axis=-1)               # (TH+2, W, 3*Cmid)

    # ---- 3x3 conv (+BN folded): 3 K-stacked matmuls, f32 value accumulation -
    # (no VMEM scratch accumulator, no zero-fill store, 3 accumulator adds).
    acc = jnp.dot(taps[0:TH].reshape(TH * W, 3 * Cmid), w2s_ref[0],
                  preferred_element_type=jnp.float32)
    for dh in (1, 2):
        acc = acc + jnp.dot(taps[dh:dh + TH].reshape(TH * W, 3 * Cmid),
                            w2s_ref[dh], preferred_element_type=jnp.float32)

    y = acc + b2_ref[...]
    y = jnp.maximum(y, LEAK * y)
    if use_residual:
        y = y + x_ref[...].reshape(TH * W, C).astype(jnp.float32)
    o_ref[...] = y.reshape(1, TH, W, C).astype(o_ref.dtype)


# --------------------------------------------------------------------------
# Tiling / VMEM heuristics
# --------------------------------------------------------------------------
def _vmem_limit_bytes():
    """Per-generation VMEM limit with compiler headroom.

    v5e/v6e (128 MiB physical) -> 96 MiB, v7x (64 MiB physical) -> 48 MiB.
    """
    cap = 128 * 1024 * 1024
    try:
        info = pltpu.get_tpu_info()
        for name in ("vmem_capacity_bytes", "vmem_size_bytes", "vmem_bytes"):
            v = getattr(info, name, None)
            if v:
                cap = int(v)
                break
    except Exception:
        pass
    return min(cap * 3 // 4, 112 * 1024 * 1024)


def _largest_divisor_leq(n, cap):
    best = 1
    d = 1
    while d * d <= n:
        if n % d == 0:
            for v in (d, n // d):
                if v <= cap:
                    best = max(best, v)
        d += 1
    return best


def _pick_block_rows(H, W, C, vmem_limit, requested=None):
    """Pick the row-strip height: largest divisor of H fitting the VMEM budget."""
    if requested is None:
        cmid = max(C // 2, 1)
        weight_bytes = 2 * 2 * (C * cmid + 9 * cmid * C)   # bf16, double-buffered
        budget = max(vmem_limit - weight_bytes - (8 << 20), 2 << 20)
        per_row = 32 * W * C + 1   # pipelined bf16 in/out tiles + f32/bf16 temps
        requested = max(8, budget // per_row)
    requested = int(min(max(requested, 1), H))
    return _largest_divisor_leq(H, requested)


# --------------------------------------------------------------------------
# One residual repeat (NHWC, W already padded to a multiple of 8)
# --------------------------------------------------------------------------
def _resblock_repeat_nhwc(x_nhwc, w1, b1, w2s, b2, use_residual, w_real,
                          block_rows):
    N, H, W, C = x_nhwc.shape
    Cmid = w1.shape[1]
    vmem_limit = _vmem_limit_bytes()
    TH = _pick_block_rows(H, W, C, vmem_limit, block_rows)
    nH = H // TH

    # Halo rows (row above / below each strip), zero at the image border.
    x_pad = jnp.pad(x_nhwc, ((0, 0), (1, 1), (0, 0), (0, 0)))
    x_top = x_pad[:, 0:H:TH]             # (N, nH, W, C)
    x_bot = x_pad[:, TH + 1:H + 2:TH]    # (N, nH, W, C)

    kernel = functools.partial(_resblock_kernel, use_residual=use_residual,
                               w_real=w_real)
    # Note: grid = (N, nH) keeps >= 2 parallel steps for v7x's two TensorCores
    # whenever N >= 2, even when a whole image fits one strip.
    return pl.pallas_call(
        kernel,
        out_shape=jax.ShapeDtypeStruct((N, H, W, C), x_nhwc.dtype),
        grid_spec=pltpu.PrefetchScalarGridSpec(
            num_scalar_prefetch=0,
            grid=(N, nH),
            in_specs=[
                pl.BlockSpec((1, TH, W, C), lambda n, h: (n, h, 0, 0)),
                pl.BlockSpec((1, 1, W, C), lambda n, h: (n, h, 0, 0)),
                pl.BlockSpec((1, 1, W, C), lambda n, h: (n, h, 0, 0)),
                # Constant index_map -> weights fetched once; kept in bf16 to
                # halve their VMEM footprint / DMA bytes.
                pl.BlockSpec((C, Cmid), lambda n, h: (0, 0)),
                pl.BlockSpec((1, Cmid), lambda n, h: (0, 0)),
                pl.BlockSpec((3, 3 * Cmid, C), lambda n, h: (0, 0, 0)),
                pl.BlockSpec((1, C), lambda n, h: (0, 0)),
            ],
            out_specs=pl.BlockSpec((1, TH, W, C), lambda n, h: (n, h, 0, 0)),
        ),
        compiler_params=pltpu.CompilerParams(
            dimension_semantics=("parallel", "parallel"),
            vmem_limit_bytes=vmem_limit),
    )(x_nhwc, x_top, x_bot, w1, b1, w2s, b2)


# --------------------------------------------------------------------------
# Parameter setup (deterministic), BN folding, one-time weight packing, wrapper
# --------------------------------------------------------------------------
def init_params(key, channels, num_repeats):
    cmid = channels // 2
    params = []
    for r in range(num_repeats):
        ks = jax.random.split(jax.random.fold_in(key, r), 12)
        p = dict(
            w1=0.1 * jax.random.normal(ks[0], (cmid, channels, 1, 1), jnp.float32),
            b1=0.1 * jax.random.normal(ks[1], (cmid,), jnp.float32),
            bn1=(1.0 + 0.1 * jax.random.normal(ks[2], (cmid,), jnp.float32),   # gamma
                 0.1 * jax.random.normal(ks[3], (cmid,), jnp.float32),          # beta
                 0.1 * jax.random.normal(ks[4], (cmid,), jnp.float32),          # run mean
                 1.0 + 0.5 * jax.random.uniform(ks[5], (cmid,), jnp.float32)),  # run var
            w2=0.1 * jax.random.normal(ks[6], (channels, cmid, 3, 3), jnp.float32),
            b2=0.1 * jax.random.normal(ks[7], (channels,), jnp.float32),
            bn2=(1.0 + 0.1 * jax.random.normal(ks[8], (channels,), jnp.float32),
                 0.1 * jax.random.normal(ks[9], (channels,), jnp.float32),
                 0.1 * jax.random.normal(ks[10], (channels,), jnp.float32),
                 1.0 + 0.5 * jax.random.uniform(ks[11], (channels,), jnp.float32)),
        )
        params.append(p)
    return params


def _fold_bn(w, b, gamma, beta, mean, var, eps=EPS):
    scale = gamma / jnp.sqrt(var + eps)
    w_f = w * scale[:, None, None, None]
    b_f = (b - mean) * scale + beta
    return w_f, b_f


def prepare_params(params):
    """Fold eval-mode BN and pre-pack kernel-layout bf16 weights (done once)."""
    prepared = []
    for p in params:
        w1f, b1f = _fold_bn(p["w1"], p["b1"], *p["bn1"])   # (Cmid, C, 1, 1)
        w2f, b2f = _fold_bn(p["w2"], p["b2"], *p["bn2"])   # (C, Cmid, 3, 3)
        cmid, c = w1f.shape[0], w1f.shape[1]
        w1k = jnp.transpose(w1f[:, :, 0, 0], (1, 0)).astype(jnp.bfloat16)      # (C, Cmid)
        # (O=C, I=Cmid, kh, kw) -> (kh, kw, Cmid, C) -> K-stack the dw taps.
        w2k = jnp.transpose(w2f, (2, 3, 1, 0)).reshape(3, 3 * cmid, c)
        w2k = w2k.astype(jnp.bfloat16)                                          # (3, 3*Cmid, C)
        prepared.append(dict(w1=w1k,
                             b1=b1f[None, :].astype(jnp.float32),
                             w2=w2k,
                             b2=b2f[None, :].astype(jnp.float32)))
    return prepared


def residual_block(x_nchw, kparams, use_residual=True, block_rows=None):
    """Forward pass matching the PyTorch ResidualBlock (eval-mode BN).

    kparams: output of prepare_params (BN already folded, weights packed).
    """
    out_dtype = x_nchw.dtype
    N, C, H, W = x_nchw.shape
    x = jnp.transpose(x_nchw, (0, 2, 3, 1)).astype(jnp.bfloat16)  # NCHW -> NHWC
    w_pad = -(-W // 8) * 8  # sublane-align the width -> free window reshapes
    if w_pad != W:
        x = jnp.pad(x, ((0, 0), (0, 0), (0, w_pad - W), (0, 0)))
    for p in kparams:
        x = _resblock_repeat_nhwc(x, p["w1"], p["b1"], p["w2"], p["b2"],
                                  use_residual, W, block_rows)
    if w_pad != W:
        x = x[:, :, :W, :]
    return jnp.transpose(x, (0, 3, 1, 2)).astype(out_dtype)  # NHWC -> NCHW


# --------------------------------------------------------------------------
# Pure-JAX reference (f32, unfolded BN) for correctness checking
# --------------------------------------------------------------------------
def _bn_ref(x, bn):
    gamma, beta, mean, var = (a[None, :, None, None] for a in bn)
    return (x - mean) / jnp.sqrt(var + EPS) * gamma + beta


def ref_forward(x, params, use_residual=True):
    dn = ("NCHW", "OIHW", "NCHW")
    for p in params:
        residual = x
        a = lax.conv_general_dilated(x, p["w1"], (1, 1), "VALID",
                                     dimension_numbers=dn)
        a = _bn_ref(a + p["b1"][None, :, None, None], p["bn1"])
        a = jnp.where(a > 0, a, LEAK * a)
        y = lax.conv_general_dilated(a, p["w2"], (1, 1), ((1, 1), (1, 1)),
                                     dimension_numbers=dn)
        y = _bn_ref(y + p["b2"][None, :, None, None], p["bn2"])
        y = jnp.where(y > 0, y, LEAK * y)
        x = y + residual if use_residual else y
    return x


# --------------------------------------------------------------------------
if __name__ == "__main__":
    N, C, H, W = 2, 4, 16, 16
    num_repeats = 2
    use_residual = True

    x = jax.random.normal(jax.random.PRNGKey(0), (N, C, H, W), jnp.float32)
    params = init_params(jax.random.PRNGKey(1), C, num_repeats)
    kparams = prepare_params(params)   # fold BN + pack weights once, outside forward

    fwd = jax.jit(functools.partial(residual_block, use_residual=use_residual))
    out = jax.block_until_ready(fwd(x, kparams))

    ref = ref_forward(x, params, use_residual=use_residual)
    assert out.shape == ref.shape == (N, C, H, W)
    # bf16 MXU operands (f32 accumulate) and bf16 inter-repeat activations ->
    # tolerance loosened accordingly (error grows slowly with num_repeats).
    assert jnp.allclose(out, ref, atol=5e-2, rtol=5e-2), (
        f"max abs err {jnp.max(jnp.abs(out - ref))}")

    print("KERNEL_OK")
</pallas_src>

<mosaic_0001>
module attributes {stable_mosaic.version = 11 : i64} {
  func.func @_resblock_kernel(%arg0: i32, %arg1: i32, %arg2: memref<1x16x16x4xbf16, #tpu.memory_space<vmem>>, %arg3: memref<1x1x16x4xbf16, #tpu.memory_space<vmem>>, %arg4: memref<1x1x16x4xbf16, #tpu.memory_space<vmem>>, %arg5: memref<4x2xbf16, #tpu.memory_space<vmem>>, %arg6: memref<1x2xf32, #tpu.memory_space<vmem>>, %arg7: memref<3x6x4xbf16, #tpu.memory_space<vmem>>, %arg8: memref<1x4xf32, #tpu.memory_space<vmem>>, %arg9: memref<1x16x16x4xbf16, #tpu.memory_space<vmem>>) attributes {dimension_semantics = [#tpu.dimension_semantics<parallel>, #tpu.dimension_semantics<parallel>], iteration_bounds = array<i64: 2, 1>, scalar_prefetch = 0 : i64, scratch_operands = 0 : i64, tpu.core_type = #tpu.core_type<tc>, window_params = [{transform_indices = @transform_0, window_bounds = array<i64: 1, 16, 16, 4>}, {transform_indices = @transform_1, window_bounds = array<i64: 1, 1, 16, 4>}, {transform_indices = @transform_2, window_bounds = array<i64: 1, 1, 16, 4>}, {pipeline_mode = #tpu.pipeline_mode<synchronous>, transform_indices = @transform_3, window_bounds = array<i64: 4, 2>}, {pipeline_mode = #tpu.pipeline_mode<synchronous>, transform_indices = @transform_4, window_bounds = array<i64: 1, 2>}, {pipeline_mode = #tpu.pipeline_mode<synchronous>, transform_indices = @transform_5, window_bounds = array<i64: 3, 6, 4>}, {pipeline_mode = #tpu.pipeline_mode<synchronous>, transform_indices = @transform_6, window_bounds = array<i64: 1, 4>}, {transform_indices = @transform_7, window_bounds = array<i64: 1, 16, 16, 4>}]} {
    %c0 = arith.constant 0 : index
    %c0_0 = arith.constant 0 : index
    %0 = vector.load %arg5[%c0, %c0_0] : memref<4x2xbf16, #tpu.memory_space<vmem>>, vector<4x2xbf16>
    %c0_1 = arith.constant 0 : index
    %c0_2 = arith.constant 0 : index
    %c0_3 = arith.constant 0 : index
    %c0_4 = arith.constant 0 : index
    %1 = vector.load %arg2[%c0_1, %c0_2, %c0_3, %c0_4] : memref<1x16x16x4xbf16, #tpu.memory_space<vmem>>, vector<1x16x16x4xbf16>
    %2 = vector.shape_cast %1 : vector<1x16x16x4xbf16> to vector<256x4xbf16>
    %cst = arith.constant dense<0.000000e+00> : vector<256x2xf32>
    %3 = tpu.matmul %2, %0, %cst {dimension_numbers = #tpu.dot_dimension_numbers<[1], [0], [0], [1], [0, 0, 1, 1], [], []>} : vector<256x4xbf16>, vector<4x2xbf16>, vector<256x2xf32> -> vector<256x2xf32>
    %c0_5 = arith.constant 0 : index
    %c0_6 = arith.constant 0 : index
    %4 = vector.load %arg6[%c0_5, %c0_6] : memref<1x2xf32, #tpu.memory_space<vmem>>, vector<1x2xf32>
    %5 = vector.broadcast %4 : vector<1x2xf32> to vector<256x2xf32>
    %6 = arith.addf %3, %5 : vector<256x2xf32>
    %cst_7 = arith.constant 1.000000e-01 : f32
    %7 = vector.broadcast %cst_7 : f32 to vector<256x2xf32>
    %8 = arith.mulf %7, %6 : vector<256x2xf32>
    %9 = arith.maximumf %6, %8 : vector<256x2xf32>
    %c0_i32 = arith.constant 0 : i32
    %10 = arith.cmpi sgt, %arg1, %c0_i32 : i32
    %cst_8 = arith.constant 1.000000e+00 : f32
    %cst_9 = arith.constant 0.000000e+00 : f32
    %11 = arith.select %10, %cst_8, %cst_9 : f32
    %c0_i32_10 = arith.constant 0 : i32
    %12 = arith.cmpi slt, %arg1, %c0_i32_10 : i32
    %cst_11 = arith.constant 1.000000e+00 : f32
    %cst_12 = arith.constant 0.000000e+00 : f32
    %13 = arith.select %12, %cst_11, %cst_12 : f32
    %c0_13 = arith.constant 0 : index
    %c0_14 = arith.constant 0 : index
    %c0_15 = arith.constant 0 : index
    %c0_16 = arith.constant 0 : index
    %14 = vector.load %arg3[%c0_13, %c0_14, %c0_15, %c0_16] : memref<1x1x16x4xbf16, #tpu.memory_space<vmem>>, vector<1x1x16x4xbf16>
    %15 = vector.shape_cast %14 : vector<1x1x16x4xbf16> to vector<16x4xbf16>
    %cst_17 = arith.constant dense<0.000000e+00> : vector<16x2xf32>
    %16 = tpu.matmul %15, %0, %cst_17 {dimension_numbers = #tpu.dot_dimension_numbers<[1], [0], [0], [1], [0, 0, 1, 1], [], []>} : vector<16x4xbf16>, vector<4x2xbf16>, vector<16x2xf32> -> vector<16x2xf32>
    %c0_18 = arith.constant 0 : index
    %c0_19 = arith.constant 0 : index
    %17 = vector.load %arg6[%c0_18, %c0_19] : memref<1x2xf32, #tpu.memory_space<vmem>>, vector<1x2xf32>
    %18 = vector.broadcast %17 : vector<1x2xf32> to vector<16x2xf32>
    %19 = arith.addf %16, %18 : vector<16x2xf32>
    %cst_20 = arith.constant 1.000000e-01 : f32
    %20 = vector.broadcast %cst_20 : f32 to vector<16x2xf32>
    %21 = arith.mulf %20, %19 : vector<16x2xf32>
    %22 = arith.maximumf %19, %21 : vector<16x2xf32>
    %23 = vector.broadcast %11 : f32 to vector<16x2xf32>
    %24 = arith.mulf %22, %23 : vector<16x2xf32>
    %c0_21 = arith.constant 0 : index
    %c0_22 = arith.constant 0 : index
    %c0_23 = arith.constant 0 : index
    %c0_24 = arith.constant 0 : index
    %25 = vector.load %arg4[%c0_21, %c0_22, %c0_23, %c0_24] : memref<1x1x16x4xbf16, #tpu.memory_space<vmem>>, vector<1x1x16x4xbf16>
    %26 = vector.shape_cast %25 : vector<1x1x16x4xbf16> to vector<16x4xbf16>
    %cst_25 = arith.constant dense<0.000000e+00> : vector<16x2xf32>
    %27 = tpu.matmul %26, %0, %cst_25 {dimension_numbers = #tpu.dot_dimension_numbers<[1], [0], [0], [1], [0, 0, 1, 1], [], []>} : vector<16x4xbf16>, vector<4x2xbf16>, vector<16x2xf32> -> vector<16x2xf32>
    %c0_26 = arith.constant 0 : index
    %c0_27 = arith.constant 0 : index
    %28 = vector.load %arg6[%c0_26, %c0_27] : memref<1x2xf32, #tpu.memory_space<vmem>>, vector<1x2xf32>
    %29 = vector.broadcast %28 : vector<1x2xf32> to vector<16x2xf32>
    %30 = arith.addf %27, %29 : vector<16x2xf32>
    %cst_28 = arith.constant 1.000000e-01 : f32
    %31 = vector.broadcast %cst_28 : f32 to vector<16x2xf32>
    %32 = arith.mulf %31, %30 : vector<16x2xf32>
    %33 = arith.maximumf %30, %32 : vector<16x2xf32>
    %34 = vector.broadcast %13 : f32 to vector<16x2xf32>
    %35 = arith.mulf %33, %34 : vector<16x2xf32>
    %36 = tpu.concatenate %24, %9, %35 in 0 : vector<16x2xf32>, vector<256x2xf32>, vector<16x2xf32> -> vector<288x2xf32>
    %37 = arith.truncf %36 : vector<288x2xf32> to vector<288x2xbf16>
    %38 = vector.shape_cast %37 : vector<288x2xbf16> to vector<18x16x2xbf16>
    %cst_29 = arith.constant 0.000000e+00 : bf16
    %39 = vector.broadcast %cst_29 : bf16 to vector<18x1x2xbf16>
    %40 = vector.extract_strided_slice %38 {offsets = [0, 0, 0], sizes = [18, 15, 2], strides = [1, 1, 1]} : vector<18x16x2xbf16> to vector<18x15x2xbf16>
    %41 = tpu.concatenate %39, %40 in 1 : vector<18x1x2xbf16>, vector<18x15x2xbf16> -> vector<18x16x2xbf16>
    %42 = vector.extract_strided_slice %38 {offsets = [0, 1, 0], sizes = [18, 15, 2], strides = [1, 1, 1]} : vector<18x16x2xbf16> to vector<18x15x2xbf16>
    %43 = tpu.concatenate %42, %39 in 1 : vector<18x15x2xbf16>, vector<18x1x2xbf16> -> vector<18x16x2xbf16>
    %44 = tpu.concatenate %41, %38, %43 in 2 : vector<18x16x2xbf16>, vector<18x16x2xbf16>, vector<18x16x2xbf16> -> vector<18x16x6xbf16>
    %45 = vector.extract_strided_slice %44 {offsets = [0, 0, 0], sizes = [16, 16, 6], strides = [1, 1, 1]} : vector<18x16x6xbf16> to vector<16x16x6xbf16>
    %46 = vector.shape_cast %45 : vector<16x16x6xbf16> to vector<256x6xbf16>
    %c0_30 = arith.constant 0 : index
    %c0_31 = arith.constant 0 : index
    %c0_32 = arith.constant 0 : index
    %47 = vector.load %arg7[%c0_30, %c0_31, %c0_32] : memref<3x6x4xbf16, #tpu.memory_space<vmem>>, vector<1x6x4xbf16>
    %48 = vector.shape_cast %47 : vector<1x6x4xbf16> to vector<6x4xbf16>
    %cst_33 = arith.constant dense<0.000000e+00> : vector<256x4xf32>
    %49 = tpu.matmul %46, %48, %cst_33 {dimension_numbers = #tpu.dot_dimension_numbers<[1], [0], [0], [1], [0, 0, 1, 1], [], []>} : vector<256x6xbf16>, vector<6x4xbf16>, vector<256x4xf32> -> vector<256x4xf32>
    %50 = vector.extract_strided_slice %44 {offsets = [1, 0, 0], sizes = [16, 16, 6], strides = [1, 1, 1]} : vector<18x16x6xbf16> to vector<16x16x6xbf16>
    %51 = vector.shape_cast %50 : vector<16x16x6xbf16> to vector<256x6xbf16>
    %c1 = arith.constant 1 : index
    %c0_34 = arith.constant 0 : index
    %c0_35 = arith.constant 0 : index
    %52 = vector.load %arg7[%c1, %c0_34, %c0_35] : memref<3x6x4xbf16, #tpu.memory_space<vmem>>, vector<1x6x4xbf16>
    %53 = vector.shape_cast %52 : vector<1x6x4xbf16> to vector<6x4xbf16>
    %cst_36 = arith.constant dense<0.000000e+00> : vector<256x4xf32>
    %54 = tpu.matmul %51, %53, %cst_36 {dimension_numbers = #tpu.dot_dimension_numbers<[1], [0], [0], [1], [0, 0, 1, 1], [], []>} : vector<256x6xbf16>, vector<6x4xbf16>, vector<256x4xf32> -> vector<256x4xf32>
    %55 = arith.addf %49, %54 : vector<256x4xf32>
    %56 = vector.extract_strided_slice %44 {offsets = [2, 0, 0], sizes = [16, 16, 6], strides = [1, 1, 1]} : vector<18x16x6xbf16> to vector<16x16x6xbf16>
    %57 = vector.shape_cast %56 : vector<16x16x6xbf16> to vector<256x6xbf16>
    %c2 = arith.constant 2 : index
    %c0_37 = arith.constant 0 : index
    %c0_38 = arith.constant 0 : index
    %58 = vector.load %arg7[%c2, %c0_37, %c0_38] : memref<3x6x4xbf16, #tpu.memory_space<vmem>>, vector<1x6x4xbf16>
    %59 = vector.shape_cast %58 : vector<1x6x4xbf16> to vector<6x4xbf16>
    %cst_39 = arith.constant dense<0.000000e+00> : vector<256x4xf32>
    %60 = tpu.matmul %57, %59, %cst_39 {dimension_numbers = #tpu.dot_dimension_numbers<[1], [0], [0], [1], [0, 0, 1, 1], [], []>} : vector<256x6xbf16>, vector<6x4xbf16>, vector<256x4xf32> -> vector<256x4xf32>
    %61 = arith.addf %55, %60 : vector<256x4xf32>
    %c0_40 = arith.constant 0 : index
    %c0_41 = arith.constant 0 : index
    %62 = vector.load %arg8[%c0_40, %c0_41] : memref<1x4xf32, #tpu.memory_space<vmem>>, vector<1x4xf32>
    %63 = vector.broadcast %62 : vector<1x4xf32> to vector<256x4xf32>
    %64 = arith.addf %61, %63 : vector<256x4xf32>
    %cst_42 = arith.constant 1.000000e-01 : f32
    %65 = vector.broadcast %cst_42 : f32 to vector<256x4xf32>
    %66 = arith.mulf %65, %64 : vector<256x4xf32>
    %67 = arith.maximumf %64, %66 : vector<256x4xf32>
    %c0_43 = arith.constant 0 : index
    %c0_44 = arith.constant 0 : index
    %c0_45 = arith.constant 0 : index
    %c0_46 = arith.constant 0 : index
    %68 = vector.load %arg2[%c0_43, %c0_44, %c0_45, %c0_46] : memref<1x16x16x4xbf16, #tpu.memory_space<vmem>>, vector<1x16x16x4xbf16>
    %69 = vector.shape_cast %68 : vector<1x16x16x4xbf16> to vector<256x4xbf16>
    %70 = arith.extf %69 : vector<256x4xbf16> to vector<256x4xf32>
    %71 = arith.addf %67, %70 : vector<256x4xf32>
    %72 = vector.shape_cast %71 : vector<256x4xf32> to vector<1x16x16x4xf32>
    %73 = arith.truncf %72 : vector<1x16x16x4xf32> to vector<1x16x16x4xbf16>
    %c0_47 = arith.constant 0 : index
    %c0_48 = arith.constant 0 : index
    %c0_49 = arith.constant 0 : index
    %c0_50 = arith.constant 0 : index
    %74 = vector.load %arg9[%c0_47, %c0_48, %c0_49, %c0_50] : memref<1x16x16x4xbf16, #tpu.memory_space<vmem>>, vector<1x16x16x4xbf16>
    tpu.vector_store %arg9[%c0_47, %c0_48, %c0_49, %c0_50], %73 {strides = array<i32>} : memref<1x16x16x4xbf16, #tpu.memory_space<vmem>>, vector<1x16x16x4xbf16>,
    return
  }
  func.func @transform_0(%arg0: i32, %arg1: i32) -> (i32, i32, i32, i32) {
    %c0_i32 = arith.constant 0 : i32
    %c0_i32_0 = arith.constant 0 : i32
    %c0_i32_1 = arith.constant 0 : i32
    return %arg0, %arg1, %c0_i32, %c0_i32_0 : i32, i32, i32, i32
  }
  func.func @transform_1(%arg0: i32, %arg1: i32) -> (i32, i32, i32, i32) {
    %c0_i32 = arith.constant 0 : i32
    %c0_i32_0 = arith.constant 0 : i32
    %c0_i32_1 = arith.constant 0 : i32
    return %arg0, %arg1, %c0_i32, %c0_i32_0 : i32, i32, i32, i32
  }
  func.func @transform_2(%arg0: i32, %arg1: i32) -> (i32, i32, i32, i32) {
    %c0_i32 = arith.constant 0 : i32
    %c0_i32_0 = arith.constant 0 : i32
    %c0_i32_1 = arith.constant 0 : i32
    return %arg0, %arg1, %c0_i32, %c0_i32_0 : i32, i32, i32, i32
  }
  func.func @transform_3(%arg0: i32, %arg1: i32) -> (i32, i32) {
    %c0_i32 = arith.constant 0 : i32
    %c0_i32_0 = arith.constant 0 : i32
    %c0_i32_1 = arith.constant 0 : i32
    return %c0_i32, %c0_i32_0 : i32, i32
  }
  func.func @transform_4(%arg0: i32, %arg1: i32) -> (i32, i32) {
    %c0_i32 = arith.constant 0 : i32
    %c0_i32_0 = arith.constant 0 : i32
    %c0_i32_1 = arith.constant 0 : i32
    return %c0_i32, %c0_i32_0 : i32, i32
  }
  func.func @transform_5(%arg0: i32, %arg1: i32) -> (i32, i32, i32) {
    %c0_i32 = arith.constant 0 : i32
    %c0_i32_0 = arith.constant 0 : i32
    %c0_i32_1 = arith.constant 0 : i32
    %c0_i32_2 = arith.constant 0 : i32
    return %c0_i32, %c0_i32_0, %c0_i32_1 : i32, i32, i32
  }
  func.func @transform_6(%arg0: i32, %arg1: i32) -> (i32, i32) {
    %c0_i32 = arith.constant 0 : i32
    %c0_i32_0 = arith.constant 0 : i32
    %c0_i32_1 = arith.constant 0 : i32
    return %c0_i32, %c0_i32_0 : i32, i32
  }
  func.func @transform_7(%arg0: i32, %arg1: i32) -> (i32, i32, i32, i32) {
    %c0_i32 = arith.constant 0 : i32
    %c0_i32_0 = arith.constant 0 : i32
    %c0_i32_1 = arith.constant 0 : i32
    return %arg0, %arg1, %c0_i32, %c0_i32_0 : i32, i32, i32, i32
  }
}

</mosaic_0001>

<llo_original>
// kernel: residual_block.2
$region0: #{residual_block.2}
  #allocation0 [shape = 'u32[]', space=smem, size = 0x4, offset = 0x4, fixed_abs, tag = 'smem constant byte address 0x4 - core index']
  #allocation1 [shape = 'u32[144,128]{1,0:T(1,128)}', space=vmem, size = 0x12000, scoped, tag = 'internal scratch']
  %s0 = inlined_call_operand.hbm [shape: bf16[2,16,16,4], index: 0, kind: input, shape index: {}]
  %s1 = inlined_call_operand.hbm [shape: bf16[2,1,16,4], index: 1, kind: input, shape index: {}, may-alias: {1,2}]
  %s2 = inlined_call_operand.hbm [shape: bf16[2,1,16,4], index: 2, kind: input, shape index: {}, may-alias: {1,2}]
  %s3 = inlined_call_operand.hbm [shape: bf16[4,2], index: 3, kind: input, shape index: {}]
  %s4 = inlined_call_operand.hbm [shape: f32[1,2], index: 4, kind: input, shape index: {}]
  %s5 = inlined_call_operand.hbm [shape: bf16[3,6,4], index: 5, kind: input, shape index: {}]
  %s6 = inlined_call_operand.hbm [shape: f32[1,4], index: 6, kind: input, shape index: {}]
  %s7 = inlined_call_operand.hbm [shape: bf16[2,16,16,4], index: 7, kind: output, shape index: {}]
  %s8 = sld [smem:[#allocation0]]
  $region89: #{residual_block.2} parent=0
    _
  %s10 = ssub.s32 1, %s8
  %s11 = scalar_select 0, %s10, %s8
  $region1: #{residual_block.2} parent=0
    #allocation2 [shape = 'u8[131072]{0}', space=vmem, size = 0x20000, scoped, tag = 'input window, operand 0']
    #allocation3 [shape = 's32[2]{0}', space=sflag, size = 0x8, scoped, tag = 'scoped memory for residual_block.2']
    #allocation4 [shape = 's32[2]{0}', space=sflag, size = 0x8, scoped, tag = 'scoped memory for residual_block.2']
    #allocation5 [shape = 'u8[8192]{0}', space=vmem, size = 0x2000, scoped, tag = 'input window, operand 1']
    #allocation6 [shape = 's32[2]{0}', space=sflag, size = 0x8, scoped, tag = 'scoped memory for residual_block.2']
    #allocation7 [shape = 'u8[8192]{0}', space=vmem, size = 0x2000, scoped, tag = 'input window, operand 2']
    #allocation8 [shape = 'u8[1024]{0}', space=vmem, size = 0x400, scoped, tag = 'input window, operand 3, single buffered']
    #allocation9 [shape = 's32[1]{0}', space=sflag, size = 0x4, scoped, tag = 'scoped memory for residual_block.2']
    #allocation10 [shape = 'u8[512]{0}', space=vmem, size = 0x400, scoped, tag = 'input window, operand 4, single buffered']
    #allocation11 [shape = 'u8[6144]{0}', space=vmem, size = 0x1800, scoped, tag = 'input window, operand 5, single buffered']
    #allocation12 [shape = 's32[1]{0}', space=sflag, size = 0x4, scoped, tag = 'scoped memory for residual_block.2']
    #allocation13 [shape = 'u8[512]{0}', space=vmem, size = 0x400, scoped, tag = 'input window, operand 6, single buffered']
    #allocation14 [shape = 'u8[131072]{0}', space=vmem, size = 0x20000, scoped, tag = 'output window, operand 0']
    %12 = vsyncpa [#allocation3], 0
    %s13 = scalar_lea.sflag [#allocation3], 1
    %14 = vsyncpa %s13, 0
    %15 = vsyncpa [#allocation6], 0
    %s16 = scalar_lea.sflag [#allocation6], 1
    %17 = vsyncpa %s16, 0
    %18 = vsyncpa [#allocation9], 0
    %19 = vsyncpa [#allocation12], 0
    %20 = vsyncpa [#allocation4], 0
    %s21 = scalar_lea.sflag [#allocation4], 1
    %22 = vsyncpa %s21, 0
    loop: start=0, step=1, limit=4
    $region2: #{residual_block.2} parent=1 // loop_pre_header
      _
    $region3: #{residual_block.2} parent=1 // loop_header
      %s24 = sphi 0, %s28
      %p25 = scmp.ge.s32.totalorder %s24, 4
      %s31 = sphi 0, %s43
      %s32 = sphi 0, %s39
      %s33 = sphi 0, %s31
      %s34 = sphi 0, %s32
      %s35 = sphi 0, %s33
      %s36 = sphi 0, %s34
      %s48 = sphi 0, %s50
      %s51 = sphi 0, %s48
      %s52 = sphi 0, %s51
      %s68 = sphi 0, %s52
      %s76 = sphi 0, %s78
      %s79 = sphi 0, %s76
      %s80 = sphi 0, %s79
      %s96 = sphi 0, %s80
      %s104 = sphi 0, %s106
      %s107 = sphi 0, %s104
      %s108 = sphi 0, %s107
      %s124 = sphi 0, %s108
      %s128 = sphi 0, %s128
      %s130 = sphi 0, %s128
      %s131 = sphi 0, %s130
      %s145 = sphi 0, %s131
      %s149 = sphi 0, %s149
      %s151 = sphi 0, %s149
      %s152 = sphi 0, %s151
      %s166 = sphi 0, %s152
      %s170 = sphi 0, %s170
      %s172 = sphi 0, %s170
      %s173 = sphi 0, %s172
      %s187 = sphi 0, %s173
      %s191 = sphi 0, %s191
      %s193 = sphi 0, %s191
      %s194 = sphi 0, %s193
      %s208 = sphi 0, %s194
      %s216 = sphi 0, %s218
      %s219 = sphi 0, %s216
      %s220 = sphi 0, %s219
      %s236 = sphi 0, %s220
    $region4: #{residual_block.2} parent=1 // loop_header_branch
      %27 = sbr.rel (%p25) target = $region8
    $region5: #{residual_block.2} parent=1 // loop_body
      %s29 = ssub.s32 %s24, 1
      %s30 = ssub.s32 %s24, 2
      %s37 = sadd.s32 1, %s32
      %p38 = scmp.ge.s32.totalorder %s37, 1
      %s39 = scalar_select %p38, 0, %s37
      %s40 = sadd.s32 1, %s31
      %s41 = scalar_select %p38, %s40, %s31
      %p42 = scmp.ge.s32.totalorder %s41, 2
      %s43 = scalar_select %p42, 0, %s41
      %s44 = ssub.s32 %s31, %s43
      %s45 = ssub.s32 %s32, %s39
      %s46 = sor.u32 %s44, %s45
      %p47 = scmp.eq.s32.totalorder %s46, 0
      %s49 = sadd.s32 %s48, 1
      %s50 = scalar_select %p47, %s48, %s49
      %p53 = pneg %p47
      %p54 = scmp.eq.s32.totalorder %s24, 1
      %p55 = por %p53, %p54
      %p56 = scmp.ne.s32.totalorder %s48, %s51
      %p57 = scmp.eq.s32.totalorder %s24, 0
      %p58 = por %p56, %p57
      %p59 = scmp.ne.s32.totalorder %s48, %s51
      %p60 = scmp.eq.s32.totalorder %s29, 1
      %p61 = por %p59, %p60
      %p62 = scmp.ne.s32.totalorder %s51, %s52
      %p63 = scmp.eq.s32.totalorder %s29, 0
      %p64 = por %p62, %p63
      %p65 = scmp.ne.s32.totalorder %s51, %s52
      %p66 = scmp.eq.s32.totalorder %s30, 1
      %p67 = por %p65, %p66
      %p69 = scmp.ne.s32.totalorder %s52, %s68
      %p70 = scmp.eq.s32.totalorder %s30, 0
      %p71 = por %p69, %p70
      %s72 = ssub.s32 %s31, %s43
      %s73 = ssub.s32 %s32, %s39
      %s74 = sor.u32 %s72, %s73
      %p75 = scmp.eq.s32.totalorder %s74, 0
      %s77 = sadd.s32 %s76, 1
      %s78 = scalar_select %p75, %s76, %s77
      %p81 = pneg %p75
      %p82 = scmp.eq.s32.totalorder %s24, 1
      %p83 = por %p81, %p82
      %p84 = scmp.ne.s32.totalorder %s76, %s79
      %p85 = scmp.eq.s32.totalorder %s24, 0
      %p86 = por %p84, %p85
      %p87 = scmp.ne.s32.totalorder %s76, %s79
      %p88 = scmp.eq.s32.totalorder %s29, 1
      %p89 = por %p87, %p88
      %p90 = scmp.ne.s32.totalorder %s79, %s80
      %p91 = scmp.eq.s32.totalorder %s29, 0
      %p92 = por %p90, %p91
      %p93 = scmp.ne.s32.totalorder %s79, %s80
      %p94 = scmp.eq.s32.totalorder %s30, 1
      %p95 = por %p93, %p94
      %p97 = scmp.ne.s32.totalorder %s80, %s96
      %p98 = scmp.eq.s32.totalorder %s30, 0
      %p99 = por %p97, %p98
      %s100 = ssub.s32 %s31, %s43
      %s101 = ssub.s32 %s32, %s39
      %s102 = sor.u32 %s100, %s101
      %p103 = scmp.eq.s32.totalorder %s102, 0
      %s105 = sadd.s32 %s104, 1
      %s106 = scalar_select %p103, %s104, %s105
      %p109 = pneg %p103
      %p110 = scmp.eq.s32.totalorder %s24, 1
      %p111 = por %p109, %p110
      %p112 = scmp.ne.s32.totalorder %s104, %s107
      %p113 = scmp.eq.s32.totalorder %s24, 0
      %p114 = por %p112, %p113
      %p115 = scmp.ne.s32.totalorder %s104, %s107
      %p116 = scmp.eq.s32.totalorder %s29, 1
      %p117 = por %p115, %p116
      %p118 = scmp.ne.s32.totalorder %s107, %s108
      %p119 = scmp.eq.s32.totalorder %s29, 0
      %p120 = por %p118, %p119
      %p121 = scmp.ne.s32.totalorder %s107, %s108
      %p122 = scmp.eq.s32.totalorder %s30, 1
      %p123 = por %p121, %p122
      %p125 = scmp.ne.s32.totalorder %s108, %s124
      %p126 = scmp.eq.s32.totalorder %s30, 0
      %p127 = por %p125, %p126
      %s129 = sadd.s32 %s128, 1
      %p132 = scmp.eq.s32.totalorder %s24, 1
      %p133 = scmp.ne.s32.totalorder %s128, %s130
      %p134 = scmp.eq.s32.totalorder %s24, 0
      %p135 = por %p133, %p134
      %p136 = scmp.ne.s32.totalorder %s128, %s130
      %p137 = scmp.eq.s32.totalorder %s29, 1
      %p138 = por %p136, %p137
      %p139 = scmp.ne.s32.totalorder %s130, %s131
      %p140 = scmp.eq.s32.totalorder %s29, 0
      %p141 = por %p139, %p140
      %p142 = scmp.ne.s32.totalorder %s130, %s131
      %p143 = scmp.eq.s32.totalorder %s30, 1
      %p144 = por %p142, %p143
      %p146 = scmp.ne.s32.totalorder %s131, %s145
      %p147 = scmp.eq.s32.totalorder %s30, 0
      %p148 = por %p146, %p147
      %s150 = sadd.s32 %s149, 1
      %p153 = scmp.eq.s32.totalorder %s24, 1
      %p154 = scmp.ne.s32.totalorder %s149, %s151
      %p155 = scmp.eq.s32.totalorder %s24, 0
      %p156 = por %p154, %p155
      %p157 = scmp.ne.s32.totalorder %s149, %s151
      %p158 = scmp.eq.s32.totalorder %s29, 1
      %p159 = por %p157, %p158
      %p160 = scmp.ne.s32.totalorder %s151, %s152
      %p161 = scmp.eq.s32.totalorder %s29, 0
      %p162 = por %p160, %p161
      %p163 = scmp.ne.s32.totalorder %s151, %s152
      %p164 = scmp.eq.s32.totalorder %s30, 1
      %p165 = por %p163, %p164
      %p167 = scmp.ne.s32.totalorder %s152, %s166
      %p168 = scmp.eq.s32.totalorder %s30, 0
      %p169 = por %p167, %p168
      %s171 = sadd.s32 %s170, 1
      %p174 = scmp.eq.s32.totalorder %s24, 1
      %p175 = scmp.ne.s32.totalorder %s170, %s172
      %p176 = scmp.eq.s32.totalorder %s24, 0
      %p177 = por %p175, %p176
      %p178 = scmp.ne.s32.totalorder %s170, %s172
      %p179 = scmp.eq.s32.totalorder %s29, 1
      %p180 = por %p178, %p179
      %p181 = scmp.ne.s32.totalorder %s172, %s173
      %p182 = scmp.eq.s32.totalorder %s29, 0
      %p183 = por %p181, %p182
      %p184 = scmp.ne.s32.totalorder %s172, %s173
      %p185 = scmp.eq.s32.totalorder %s30, 1
      %p186 = por %p184, %p185
      %p188 = scmp.ne.s32.totalorder %s173, %s187
      %p189 = scmp.eq.s32.totalorder %s30, 0
      %p190 = por %p188, %p189
      %s192 = sadd.s32 %s191, 1
      %p195 = scmp.eq.s32.totalorder %s24, 1
      %p196 = scmp.ne.s32.totalorder %s191, %s193
      %p197 = scmp.eq.s32.totalorder %s24, 0
      %p198 = por %p196, %p197
      %p199 = scmp.ne.s32.totalorder %s191, %s193
      %p200 = scmp.eq.s32.totalorder %s29, 1
      %p201 = por %p199, %p200
      %p202 = scmp.ne.s32.totalorder %s193, %s194
      %p203 = scmp.eq.s32.totalorder %s29, 0
      %p204 = por %p202, %p203
      %p205 = scmp.ne.s32.totalorder %s193, %s194
      %p206 = scmp.eq.s32.totalorder %s30, 1
      %p207 = por %p205, %p206
      %p209 = scmp.ne.s32.totalorder %s194, %s208
      %p210 = scmp.eq.s32.totalorder %s30, 0
      %p211 = por %p209, %p210
      %s212 = ssub.s32 %s31, %s43
      %s213 = ssub.s32 %s32, %s39
      %s214 = sor.u32 %s212, %s213
      %p215 = scmp.eq.s32.totalorder %s214, 0
      %s217 = sadd.s32 %s216, 1
      %s218 = scalar_select %p215, %s216, %s217
      %p221 = pneg %p215
      %p222 = scmp.eq.s32.totalorder %s24, 1
      %p223 = por %p221, %p222
      %p224 = scmp.ne.s32.totalorder %s216, %s219
      %p225 = scmp.eq.s32.totalorder %s24, 0
      %p226 = por %p224, %p225
      %p227 = scmp.ne.s32.totalorder %s216, %s219
      %p228 = scmp.eq.s32.totalorder %s29, 1
      %p229 = por %p227, %p228
      %p230 = scmp.ne.s32.totalorder %s219, %s220
      %p231 = scmp.eq.s32.totalorder %s29, 0
      %p232 = por %p230, %p231
      %p233 = scmp.ne.s32.totalorder %s219, %s220
      %p234 = scmp.eq.s32.totalorder %s30, 1
      %p235 = por %p233, %p234
      %p237 = scmp.ne.s32.totalorder %s220, %s236
      %p238 = scmp.eq.s32.totalorder %s30, 0
      %p239 = por %p237, %p238
      %p240 = scmp.le.s32.totalorder 1, %s24
      %p241 = scmp.lt.s32.totalorder %s24, 3
      %p242 = pnand %p240, %p241
      %p243 = pneg %p242
      // Predicated region
      $region9: #{residual_block.2} parent=5 // pred_check
        _
      $region10: #{residual_block.2} parent=5 // pred_check_branch
        %245 = sbr.rel (%p242) target = $region12
      $region11: #{residual_block.2} parent=5 // pred_region
        %s246 = ssub.s32 %s24, 1
        // Predicated region
        $region13: #{residual_block.2} parent=11 // pred_check
          %p247 = pneg %p141
        $region14: #{residual_block.2} parent=11 // pred_check_branch
          %249 = sbr.rel (%p247) target = $region16
        $region15: #{residual_block.2} parent=11 // pred_region
          %s251 = ssub.s32 32, 32
          %252 = vsyncadd [#allocation9], %s251
          %s254 = sshll.u32 [#allocation8], 4
          %s255 = int_to_ptr.vmem [resolvable:$true] %s254
          %257 = dma.hbm_to_vmem [thread:$0]  %s3, 32, %s255, [#allocation9]
        $region16: #{residual_block.2} parent=11 // pred_fallthru
          _
        // Predicated region
        $region17: #{residual_block.2} parent=11 // pred_check
          %p258 = pneg %p162
        $region18: #{residual_block.2} parent=11 // pred_check_branch
          %260 = sbr.rel (%p258) target = $region20
        $region19: #{residual_block.2} parent=11 // pred_region
          %s262 = ssub.s32 16, 16
          %263 = vsyncadd [#allocation9], %s262
          %s265 = sshll.u32 [#allocation10], 4
          %s266 = int_to_ptr.vmem [resolvable:$true] %s265
          %268 = dma.hbm_to_vmem [thread:$0]  %s4, 16, %s266, [#allocation9]
        $region20: #{residual_block.2} parent=11 // pred_fallthru
          _
        // Predicated region
        $region21: #{residual_block.2} parent=11 // pred_check
          %p269 = pneg %p183
        $region22: #{residual_block.2} parent=11 // pred_check_branch
          %271 = sbr.rel (%p269) target = $region24
        $region23: #{residual_block.2} parent=11 // pred_region
          %s273 = ssub.s32 192, 192
          %274 = vsyncadd [#allocation12], %s273
          %s275 = sshll.u32 [#allocation11], 4
          %s276 = int_to_ptr.vmem [resolvable:$true] %s275
          %281 = dma.hbm_to_vmem [thread:$0]  %s5, 192, %s276, [#allocation12], 64, 64, 4
        $region24: #{residual_block.2} parent=11 // pred_fallthru
          _
        // Predicated region
        $region25: #{residual_block.2} parent=11 // pred_check
          %p282 = pneg %p204
        $region26: #{residual_block.2} parent=11 // pred_check_branch
          %284 = sbr.rel (%p282) target = $region28
        $region27: #{residual_block.2} parent=11 // pred_region
          %s286 = ssub.s32 16, 16
          %287 = vsyncadd [#allocation12], %s286
          %s289 = sshll.u32 [#allocation13], 4
          %s290 = int_to_ptr.vmem [resolvable:$true] %s289
          %292 = dma.hbm_to_vmem [thread:$0]  %s6, 16, %s290, [#allocation12]
        $region28: #{residual_block.2} parent=11 // pred_fallthru
          _
      $region12: #{residual_block.2} parent=5 // pred_fallthru
        _
      %p293 = scmp.lt.s32.totalorder %s24, 2
      // Predicated region
      $region29: #{residual_block.2} parent=5 // pred_check
        %p294 = pneg %p293
      $region30: #{residual_block.2} parent=5 // pred_check_branch
        %296 = sbr.rel (%p294) target = $region32
      $region31: #{residual_block.2} parent=5 // pred_region
        // Predicated region
        $region33: #{residual_block.2} parent=31 // pred_check
          %p297 = pneg %p58
        $region34: #{residual_block.2} parent=31 // pred_check_branch
          %299 = sbr.rel (%p297) target = $region36
        $region35: #{residual_block.2} parent=31 // pred_region
          %s300 = sand.u32 %s48, 1
          %s301 = scalar_lea.sflag [#allocation3], %s300
          %s302 = sand.u32 %s48, 1
          %s303 = smul.addr %s302, 128
          %s304 = scalar_lea.vmem [#allocation2], %s303
          %s305 = smul.u32 16, %s32
          %s307 = ssub.s32 2048, 2048
          %308 = vsyncadd %s301, %s307
          %s309 = smul.addr %s305, 2
          %s310 = smul.addr %s31, 32
          %s311 = sadd.s32 %s309, %s310
          %s312 = smul.addr %s311, 64
          %s313 = scalar_lea.hbm %s0, %s312
          %s314 = sshll.u32 %s304, 4
          %s315 = int_to_ptr.vmem [resolvable:$true] %s314
          %320 = dma.hbm_to_vmem [thread:$0]  %s313, 2048, %s315, %s301, 64, 64, 4
        $region36: #{residual_block.2} parent=31 // pred_fallthru
          _
        // Predicated region
        $region37: #{residual_block.2} parent=31 // pred_check
          %p321 = pneg %p86
        $region38: #{residual_block.2} parent=31 // pred_check_branch
          %323 = sbr.rel (%p321) target = $region40
        $region39: #{residual_block.2} parent=31 // pred_region
          %s324 = sand.u32 %s24, 1
          %s325 = scalar_lea.sflag [#allocation6], %s324
          %s326 = sand.u32 %s76, 1
          %s327 = smul.addr %s326, 8
          %s328 = scalar_lea.vmem [#allocation5], %s327
          %s330 = ssub.s32 128, 128
          %331 = vsyncadd %s325, %s330
          %s332 = smul.addr %s32, 2
          %s333 = smul.addr %s31, 2
          %s334 = sadd.s32 %s332, %s333
          %s335 = smul.addr %s334, 64
          %s336 = scalar_lea.hbm %s1, %s335
          %s337 = sshll.u32 %s328, 4
          %s338 = int_to_ptr.vmem [resolvable:$true] %s337
          %343 = dma.hbm_to_vmem [thread:$0]  %s336, 128, %s338, %s325, 64, 64, 4
        $region40: #{residual_block.2} parent=31 // pred_fallthru
          _
        // Predicated region
        $region41: #{residual_block.2} parent=31 // pred_check
          %p344 = pneg %p114
        $region42: #{residual_block.2} parent=31 // pred_check_branch
          %346 = sbr.rel (%p344) target = $region44
        $region43: #{residual_block.2} parent=31 // pred_region
          %s347 = sand.u32 %s24, 1
          %s348 = scalar_lea.sflag [#allocation6], %s347
          %s349 = sand.u32 %s104, 1
          %s350 = smul.addr %s349, 8
          %s351 = scalar_lea.vmem [#allocation7], %s350
          %s353 = ssub.s32 128, 128
          %354 = vsyncadd %s348, %s353
          %s355 = smul.addr %s32, 2
          %s356 = smul.addr %s31, 2
          %s357 = sadd.s32 %s355, %s356
          %s358 = smul.addr %s357, 64
          %s359 = scalar_lea.hbm %s2, %s358
          %s360 = sshll.u32 %s351, 4
          %s361 = int_to_ptr.vmem [resolvable:$true] %s360
          %366 = dma.hbm_to_vmem [thread:$0]  %s359, 128, %s361, %s348, 64, 64, 4
        $region44: #{residual_block.2} parent=31 // pred_fallthru
          _
      $region32: #{residual_block.2} parent=5 // pred_fallthru
        _
      %p367 = scmp.le.s32.totalorder 1, %s24
      %p368 = scmp.lt.s32.totalorder %s24, 3
      %p369 = pnand %p367, %p368
      %p370 = pneg %p369
      // Predicated region
      $region45: #{residual_block.2} parent=5 // pred_check
        _
      $region46: #{residual_block.2} parent=5 // pred_check_branch
        %372 = sbr.rel (%p369) target = $region48
      $region47: #{residual_block.2} parent=5 // pred_region
        %s373 = ssub.s32 %s24, 1
        %s374 = sand.u32 %s51, 1
        %s375 = scalar_lea.sflag [#allocation3], %s374
        %s376 = sand.u32 %s51, 1
        %s377 = smul.addr %s376, 128
        %s378 = scalar_lea.vmem [#allocation2], %s377
        // Predicated region
        $region49: #{residual_block.2} parent=47 // pred_check
          %p379 = pneg %p64
        $region50: #{residual_block.2} parent=47 // pred_check_branch
          %381 = sbr.rel (%p379) target = $region52
        $region51: #{residual_block.2} parent=47 // pred_region
          %382 = dma.done %s375, 2048
        $region52: #{residual_block.2} parent=47 // pred_fallthru
          _
        %s383 = sand.u32 %s29, 1
        %s384 = scalar_lea.sflag [#allocation6], %s383
        %s385 = sand.u32 %s79, 1
        %s386 = smul.addr %s385, 8
        %s387 = scalar_lea.vmem [#allocation5], %s386
        // Predicated region
        $region53: #{residual_block.2} parent=47 // pred_check
          %p388 = pneg %p92
        $region54: #{residual_block.2} parent=47 // pred_check_branch
          %390 = sbr.rel (%p388) target = $region56
        $region55: #{residual_block.2} parent=47 // pred_region
          %391 = dma.done %s384, 128
        $region56: #{residual_block.2} parent=47 // pred_fallthru
          _
        %s392 = sand.u32 %s29, 1
        %s393 = scalar_lea.sflag [#allocation6], %s392
        %s394 = sand.u32 %s107, 1
        %s395 = smul.addr %s394, 8
        %s396 = scalar_lea.vmem [#allocation7], %s395
        // Predicated region
        $region57: #{residual_block.2} parent=47 // pred_check
          %p397 = pneg %p120
        $region58: #{residual_block.2} parent=47 // pred_check_branch
          %399 = sbr.rel (%p397) target = $region60
        $region59: #{residual_block.2} parent=47 // pred_region
          %400 = dma.done %s393, 128
        $region60: #{residual_block.2} parent=47 // pred_fallthru
          _
        // Predicated region
        $region61: #{residual_block.2} parent=47 // pred_check
          %p401 = pneg %p141
        $region62: #{residual_block.2} parent=47 // pred_check_branch
          %403 = sbr.rel (%p401) target = $region64
        $region63: #{residual_block.2} parent=47 // pred_region
          %404 = dma.done [#allocation9], 32
        $region64: #{residual_block.2} parent=47 // pred_fallthru
          _
        // Predicated region
        $region65: #{residual_block.2} parent=47 // pred_check
          %p405 = pneg %p162
        $region66: #{residual_block.2} parent=47 // pred_check_branch
          %407 = sbr.rel (%p405) target = $region68
        $region67: #{residual_block.2} parent=47 // pred_region
          %408 = dma.done [#allocation9], 16
        $region68: #{residual_block.2} parent=47 // pred_fallthru
          _
        // Predicated region
        $region69: #{residual_block.2} parent=47 // pred_check
          %p409 = pneg %p183
        $region70: #{residual_block.2} parent=47 // pred_check_branch
          %411 = sbr.rel (%p409) target = $region72
        $region71: #{residual_block.2} parent=47 // pred_region
          %412 = dma.done [#allocation12], 192
        $region72: #{residual_block.2} parent=47 // pred_fallthru
          _
        // Predicated region
        $region73: #{residual_block.2} parent=47 // pred_check
          %p413 = pneg %p204
        $region74: #{residual_block.2} parent=47 // pred_check_branch
          %415 = sbr.rel (%p413) target = $region76
        $region75: #{residual_block.2} parent=47 // pred_region
          %416 = dma.done [#allocation12], 16
        $region76: #{residual_block.2} parent=47 // pred_fallthru
          _
        %s417 = sand.u32 %s51, 1
        %s418 = scalar_lea.sflag [#allocation3], %s417
        %s419 = sand.u32 %s51, 1
        %s420 = smul.addr %s419, 128
        %s421 = scalar_lea.vmem [#allocation2], %s420
        %p422 = pneg %p64
        %p423 = pneg %p61
        %s424 = sand.u32 %s29, 1
        %s425 = scalar_lea.sflag [#allocation6], %s424
        %s426 = sand.u32 %s79, 1
        %s427 = smul.addr %s426, 8
        %s428 = scalar_lea.vmem [#allocation5], %s427
        %p429 = pneg %p92
        %p430 = pneg %p89
        %s431 = sand.u32 %s29, 1
        %s432 = scalar_lea.sflag [#allocation6], %s431
        %s433 = sand.u32 %s107, 1
        %s434 = smul.addr %s433, 8
        %s435 = scalar_lea.vmem [#allocation7], %s434
        %p436 = pneg %p120
        %p437 = pneg %p117
        %p438 = pneg %p141
        %p439 = pneg %p138
        %p440 = pneg %p162
        %p441 = pneg %p159
        %p442 = pneg %p183
        %p443 = pneg %p180
        %p444 = pneg %p204
        %p445 = pneg %p201
        %p446 = pneg %p232
        %p447 = pneg %p229
        %s448 = sand.u32 %s219, 1
        %s449 = scalar_lea.sflag [#allocation4], %s448
        %s450 = sand.u32 %s219, 1
        %s451 = smul.addr %s450, 128
        %s452 = scalar_lea.vmem [#allocation14], %s451
        %s453 = smul.u32 16, %s34
        %s454 = smul.u32 16, %s34
        %v456 = vld [vmem:[#allocation8] sm:$0x3]
        %v457 = vld [vmem:[%s378] sm:$0xf]
        %v458 = vld [vmem:[%s378 + $0x4] sm:$0xf]
        %v459 = vld [vmem:[%s378 + $0x8] sm:$0xf]
        %v460 = vld [vmem:[%s378 + $0xc] sm:$0xf]
        %v461 = vld [vmem:[%s378 + $0x10] sm:$0xf]
        %v462 = vld [vmem:[%s378 + $0x14] sm:$0xf]
        %v463 = vld [vmem:[%s378 + $0x18] sm:$0xf]
        %v464 = vld [vmem:[%s378 + $0x1c] sm:$0xf]
        %v465 = vld [vmem:[%s378 + $0x20] sm:$0xf]
        %v466 = vld [vmem:[%s378 + $0x24] sm:$0xf]
        %v467 = vld [vmem:[%s378 + $0x28] sm:$0xf]
        %v468 = vld [vmem:[%s378 + $0x2c] sm:$0xf]
        %v469 = vld [vmem:[%s378 + $0x30] sm:$0xf]
        %v470 = vld [vmem:[%s378 + $0x34] sm:$0xf]
        %v471 = vld [vmem:[%s378 + $0x38] sm:$0xf]
        %v472 = vld [vmem:[%s378 + $0x3c] sm:$0xf]
        %v473 = vld [vmem:[%s378 + $0x40] sm:$0xf]
        %v474 = vld [vmem:[%s378 + $0x44] sm:$0xf]
        %v475 = vld [vmem:[%s378 + $0x48] sm:$0xf]
        %v476 = vld [vmem:[%s378 + $0x4c] sm:$0xf]
        %v477 = vld [vmem:[%s378 + $0x50] sm:$0xf]
        %v478 = vld [vmem:[%s378 + $0x54] sm:$0xf]
        %v479 = vld [vmem:[%s378 + $0x58] sm:$0xf]
        %v480 = vld [vmem:[%s378 + $0x5c] sm:$0xf]
        %v481 = vld [vmem:[%s378 + $0x60] sm:$0xf]
        %v482 = vld [vmem:[%s378 + $0x64] sm:$0xf]
        %v483 = vld [vmem:[%s378 + $0x68] sm:$0xf]
        %v484 = vld [vmem:[%s378 + $0x6c] sm:$0xf]
        %v485 = vld [vmem:[%s378 + $0x70] sm:$0xf]
        %v486 = vld [vmem:[%s378 + $0x74] sm:$0xf]
        %v487 = vld [vmem:[%s378 + $0x78] sm:$0xf]
        %v488 = vld [vmem:[%s378 + $0x7c] sm:$0xf]
        %v489 = vld [vmem:[#allocation10] sm:$0x1]
        %v491 = vlaneseq
        %v492 = vshrl.u32 %v491, 7
        %v493 = vsub.s32 0, %v492
        %v494 = vrot.slane %v489, %v493
        %v528 = vunpack.c.l.b16 %v457
        %v529 = vunpack.c.l.b16 %v458
        %v530 = vunpack.c.l.b16 %v459
        %v531 = vunpack.c.l.b16 %v460
        %v532 = vunpack.c.l.b16 %v461
        %v533 = vunpack.c.l.b16 %v462
        %v534 = vunpack.c.l.b16 %v463
        %v535 = vunpack.c.l.b16 %v464
        %v536 = vunpack.c.l.b16 %v465
        %v537 = vunpack.c.l.b16 %v466
        %v538 = vunpack.c.l.b16 %v467
        %v539 = vunpack.c.l.b16 %v468
        %v540 = vunpack.c.l.b16 %v469
        %v541 = vunpack.c.l.b16 %v470
        %v542 = vunpack.c.l.b16 %v471
        %v543 = vunpack.c.l.b16 %v472
        %v544 = vunpack.c.l.b16 %v473
        %v545 = vunpack.c.l.b16 %v474
        %v546 = vunpack.c.l.b16 %v475
        %v547 = vunpack.c.l.b16 %v476
        %v548 = vunpack.c.l.b16 %v477
        %v549 = vunpack.c.l.b16 %v478
        %v550 = vunpack.c.l.b16 %v479
        %v551 = vunpack.c.l.b16 %v480
        %v552 = vunpack.c.l.b16 %v481
        %v553 = vunpack.c.l.b16 %v482
        %v554 = vunpack.c.l.b16 %v483
        %v555 = vunpack.c.l.b16 %v484
        %v556 = vunpack.c.l.b16 %v485
        %v557 = vunpack.c.l.b16 %v486
        %v558 = vunpack.c.l.b16 %v487
        %v559 = vunpack.c.l.b16 %v488
        %v560 = vpack.c.b16 %v529, %v528
        %v561 = vpack.c.b16 %v531, %v530
        %v562 = vpack.c.b16 %v533, %v532
        %v563 = vpack.c.b16 %v535, %v534
        %v564 = vpack.c.b16 %v537, %v536
        %v565 = vpack.c.b16 %v539, %v538
        %v566 = vpack.c.b16 %v541, %v540
        %v567 = vpack.c.b16 %v543, %v542
        %v568 = vpack.c.b16 %v545, %v544
        %v569 = vpack.c.b16 %v547, %v546
        %v570 = vpack.c.b16 %v549, %v548
        %v571 = vpack.c.b16 %v551, %v550
        %v572 = vpack.c.b16 %v553, %v552
        %v573 = vpack.c.b16 %v555, %v554
        %v574 = vpack.c.b16 %v557, %v556
        %v575 = vpack.c.b16 %v559, %v558
        %vm576 = vcmask 31744
        %v578 = vsel %vm576, %v560, 0
        %v581 = vsel %vm576, %v561, 0
        %v584 = vsel %vm576, %v562, 0
        %v587 = vsel %vm576, %v563, 0
        %v590 = vsel %vm576, %v564, 0
        %v593 = vsel %vm576, %v565, 0
        %v596 = vsel %vm576, %v566, 0
        %v599 = vsel %vm576, %v567, 0
        %v602 = vsel %vm576, %v568, 0
        %v605 = vsel %vm576, %v569, 0
        %v608 = vsel %vm576, %v570, 0
        %v611 = vsel %vm576, %v571, 0
        %v614 = vsel %vm576, %v572, 0
        %v617 = vsel %vm576, %v573, 0
        %v620 = vsel %vm576, %v574, 0
        %v623 = vsel %vm576, %v575, 0
        %vm625 = vcmask 1041408
        %v627 = vsel %vm625, %v456, 0
        %629 = vmatprep.subr.bf16.mxu0 0
        %630 = vmatpush1.bf16.msra.mxu0 %v627
        %631 = vmatprep.subr.bf16.mxu0 0
        %632 = vmatpush1.bf16.msra.mxu0 0
        %633 = vmatprep.subr.bf16.mxu0 0
        %634 = vmatpush1.bf16.msra.mxu0 0
        %635 = vmatprep.subr.bf16.mxu0 0
        %636 = vmatpush1.bf16.msra.mxu0 0
        %637 = vmatprep.subr.bf16.mxu0 0
        %638 = vmatpush1.bf16.msra.mxu0 0
        %639 = vmatprep.subr.bf16.mxu0 0
        %640 = vmatpush1.bf16.msra.mxu0 0
        %641 = vmatprep.subr.bf16.mxu0 0
        %642 = vmatpush1.bf16.msra.mxu0 0
        %643 = vmatprep.subr.bf16.mxu0 0
        %644 = vmatpush1.bf16.msra.mxu0 0
        %645 = vmatprep.subr.bf16.mxu0 0
        %646 = vmatpush1.bf16.msra.mxu0 0
        %647 = vmatprep.subr.bf16.mxu0 0
        %648 = vmatpush1.bf16.msra.mxu0 0
        %649 = vmatprep.subr.bf16.mxu0 0
        %650 = vmatpush1.bf16.msra.mxu0 0
        %651 = vmatprep.subr.bf16.mxu0 0
        %652 = vmatpush1.bf16.msra.mxu0 0
        %653 = vmatprep.subr.bf16.mxu0 0
        %654 = vmatpush1.bf16.msra.mxu0 0
        %655 = vmatprep.subr.bf16.mxu0 0
        %656 = vmatpush1.bf16.msra.mxu0 0
        %657 = vmatprep.subr.bf16.mxu0 0
        %658 = vmatpush1.bf16.msra.mxu0 0
        %659 = vmatprep.subr.bf16.mxu0 0
        %660 = vmatpush1.bf16.msra.mxu0 0
        %661 = vmatprep.mubr.bf16.mxu0 0
        %662 = vmatmul.mubr.bf16.gmra.mrb[0].mxu0 %v578
        %v663 = vpop.f32.mrb[0].mxu0
        %v664 = vadd.f32 %v494, %v663
        %v665 = vpop.f32.mrb[0].mxu0
        %v666 = vpop.f32.mrb[0].mxu0
        %v667 = vadd.f32 %v494, %v666
        %v668 = vpop.f32.mrb[0].mxu0
        %669 = vmatprep.mubr.bf16.mxu0 0
        %670 = vmatmul.mubr.bf16.gmra.mrb[0].mxu0 %v581
        %v671 = vpop.f32.mrb[0].mxu0
        %v672 = vadd.f32 %v494, %v671
        %v673 = vpop.f32.mrb[0].mxu0
        %v674 = vpop.f32.mrb[0].mxu0
        %v675 = vadd.f32 %v494, %v674
        %v676 = vpop.f32.mrb[0].mxu0
        %677 = vmatprep.mubr.bf16.mxu0 0
        %678 = vmatmul.mubr.bf16.gmra.mrb[0].mxu0 %v584
        %v679 = vpop.f32.mrb[0].mxu0
        %v680 = vadd.f32 %v494, %v679
        %v681 = vpop.f32.mrb[0].mxu0
        %v682 = vpop.f32.mrb[0].mxu0
        %v683 = vadd.f32 %v494, %v682
        %v684 = vpop.f32.mrb[0].mxu0
        %685 = vmatprep.mubr.bf16.mxu0 0
        %686 = vmatmul.mubr.bf16.gmra.mrb[0].mxu0 %v587
        %v687 = vpop.f32.mrb[0].mxu0
        %v688 = vadd.f32 %v494, %v687
        %v689 = vpop.f32.mrb[0].mxu0
        %v690 = vpop.f32.mrb[0].mxu0
        %v691 = vadd.f32 %v494, %v690
        %v692 = vpop.f32.mrb[0].mxu0
        %693 = vmatprep.mubr.bf16.mxu0 0
        %694 = vmatmul.mubr.bf16.gmra.mrb[0].mxu0 %v590
        %v695 = vpop.f32.mrb[0].mxu0
        %v696 = vadd.f32 %v494, %v695
        %v697 = vpop.f32.mrb[0].mxu0
        %v698 = vpop.f32.mrb[0].mxu0
        %v699 = vadd.f32 %v494, %v698
        %v700 = vpop.f32.mrb[0].mxu0
        %701 = vmatprep.mubr.bf16.mxu0 0
        %702 = vmatmul.mubr.bf16.gmra.mrb[0].mxu0 %v593
        %v703 = vpop.f32.mrb[0].mxu0
        %v704 = vadd.f32 %v494, %v703
        %v705 = vpop.f32.mrb[0].mxu0
        %v706 = vpop.f32.mrb[0].mxu0
        %v707 = vadd.f32 %v494, %v706
        %v708 = vpop.f32.mrb[0].mxu0
        %709 = vmatprep.mubr.bf16.mxu0 0
        %710 = vmatmul.mubr.bf16.gmra.mrb[0].mxu0 %v596
        %v711 = vpop.f32.mrb[0].mxu0
        %v712 = vadd.f32 %v494, %v711
        %v713 = vpop.f32.mrb[0].mxu0
        %v714 = vpop.f32.mrb[0].mxu0
        %v715 = vadd.f32 %v494, %v714
        %v716 = vpop.f32.mrb[0].mxu0
        %717 = vmatprep.mubr.bf16.mxu0 0
        %718 = vmatmul.mubr.bf16.gmra.mrb[0].mxu0 %v599
        %v719 = vpop.f32.mrb[0].mxu0
        %v720 = vadd.f32 %v494, %v719
        %v721 = vpop.f32.mrb[0].mxu0
        %v722 = vpop.f32.mrb[0].mxu0
        %v723 = vadd.f32 %v494, %v722
        %v724 = vpop.f32.mrb[0].mxu0
        %725 = vmatprep.mubr.bf16.mxu0 0
        %726 = vmatmul.mubr.bf16.gmra.mrb[0].mxu0 %v602
        %v727 = vpop.f32.mrb[0].mxu0
        %v728 = vadd.f32 %v494, %v727
        %v729 = vpop.f32.mrb[0].mxu0
        %v730 = vpop.f32.mrb[0].mxu0
        %v731 = vadd.f32 %v494, %v730
        %v732 = vpop.f32.mrb[0].mxu0
        %733 = vmatprep.mubr.bf16.mxu0 0
        %734 = vmatmul.mubr.bf16.gmra.mrb[0].mxu0 %v605
        %v735 = vpop.f32.mrb[0].mxu0
        %v736 = vadd.f32 %v494, %v735
        %v737 = vpop.f32.mrb[0].mxu0
        %v738 = vpop.f32.mrb[0].mxu0
        %v739 = vadd.f32 %v494, %v738
        %v740 = vpop.f32.mrb[0].mxu0
        %741 = vmatprep.mubr.bf16.mxu0 0
        %742 = vmatmul.mubr.bf16.gmra.mrb[0].mxu0 %v608
        %v743 = vpop.f32.mrb[0].mxu0
        %v744 = vadd.f32 %v494, %v743
        %v745 = vpop.f32.mrb[0].mxu0
        %v746 = vpop.f32.mrb[0].mxu0
        %v747 = vadd.f32 %v494, %v746
        %v748 = vpop.f32.mrb[0].mxu0
        %749 = vmatprep.mubr.bf16.mxu0 0
        %750 = vmatmul.mubr.bf16.gmra.mrb[0].mxu0 %v611
        %v751 = vpop.f32.mrb[0].mxu0
        %v752 = vadd.f32 %v494, %v751
        %v753 = vpop.f32.mrb[0].mxu0
        %v754 = vpop.f32.mrb[0].mxu0
        %v755 = vadd.f32 %v494, %v754
        %v756 = vpop.f32.mrb[0].mxu0
        %757 = vmatprep.mubr.bf16.mxu0 0
        %758 = vmatmul.mubr.bf16.gmra.mrb[0].mxu0 %v614
        %v759 = vpop.f32.mrb[0].mxu0
        %v760 = vadd.f32 %v494, %v759
        %v761 = vpop.f32.mrb[0].mxu0
        %v762 = vpop.f32.mrb[0].mxu0
        %v763 = vadd.f32 %v494, %v762
        %v764 = vpop.f32.mrb[0].mxu0
        %765 = vmatprep.mubr.bf16.mxu0 0
        %766 = vmatmul.mubr.bf16.gmra.mrb[0].mxu0 %v617
        %v767 = vpop.f32.mrb[0].mxu0
        %v768 = vadd.f32 %v494, %v767
        %v769 = vpop.f32.mrb[0].mxu0
        %v770 = vpop.f32.mrb[0].mxu0
        %v771 = vadd.f32 %v494, %v770
        %v772 = vpop.f32.mrb[0].mxu0
        %773 = vmatprep.mubr.bf16.mxu0 0
        %774 = vmatmul.mubr.bf16.gmra.mrb[0].mxu0 %v620
        %v775 = vpop.f32.mrb[0].mxu0
        %v776 = vadd.f32 %v494, %v775
        %v777 = vpop.f32.mrb[0].mxu0
        %v778 = vpop.f32.mrb[0].mxu0
        %v779 = vadd.f32 %v494, %v778
        %v780 = vpop.f32.mrb[0].mxu0
        %781 = vmatprep.mubr.bf16.mxu0 0
        %782 = vmatmul.mubr.bf16.gmra.mrb[0].mxu0 %v623
        %v783 = vpop.f32.mrb[0].mxu0
        %v784 = vadd.f32 %v494, %v783
        %v785 = vpop.f32.mrb[0].mxu0
        %v786 = vpop.f32.mrb[0].mxu0
        %v787 = vadd.f32 %v494, %v786
        %v788 = vpop.f32.mrb[0].mxu0
        %789 = vdwg.mxu0
        %v790 = vmul.f32 %v664, 0.1
        %v791 = vmul.f32 %v667, 0.1
        %v792 = vmul.f32 %v672, 0.1
        %v793 = vmul.f32 %v675, 0.1
        %v794 = vmul.f32 %v680, 0.1
        %v795 = vmul.f32 %v683, 0.1
        %v796 = vmul.f32 %v688, 0.1
        %v797 = vmul.f32 %v691, 0.1
        %v798 = vmul.f32 %v696, 0.1
        %v799 = vmul.f32 %v699, 0.1
        %v800 = vmul.f32 %v704, 0.1
        %v801 = vmul.f32 %v707, 0.1
        %v802 = vmul.f32 %v712, 0.1
        %v803 = vmul.f32 %v715, 0.1
        %v804 = vmul.f32 %v720, 0.1
        %v805 = vmul.f32 %v723, 0.1
        %v806 = vmul.f32 %v728, 0.1
        %v807 = vmul.f32 %v731, 0.1
        %v808 = vmul.f32 %v736, 0.1
        %v809 = vmul.f32 %v739, 0.1
        %v810 = vmul.f32 %v744, 0.1
        %v811 = vmul.f32 %v747, 0.1
        %v812 = vmul.f32 %v752, 0.1
        %v813 = vmul.f32 %v755, 0.1
        %v814 = vmul.f32 %v760, 0.1
        %v815 = vmul.f32 %v763, 0.1
        %v816 = vmul.f32 %v768, 0.1
        %v817 = vmul.f32 %v771, 0.1
        %v818 = vmul.f32 %v776, 0.1
        %v819 = vmul.f32 %v779, 0.1
        %v820 = vmul.f32 %v784, 0.1
        %v821 = vmul.f32 %v787, 0.1
        %v822 = vmax.f32 %v664, %v790
        %v823 = vmax.f32 %v667, %v791
        %v824 = vmax.f32 %v672, %v792
        %v825 = vmax.f32 %v675, %v793
        %v826 = vmax.f32 %v680, %v794
        %v827 = vmax.f32 %v683, %v795
        %v828 = vmax.f32 %v688, %v796
        %v829 = vmax.f32 %v691, %v797
        %v830 = vmax.f32 %v696, %v798
        %v831 = vmax.f32 %v699, %v799
        %v832 = vmax.f32 %v704, %v800
        %v833 = vmax.f32 %v707, %v801
        %v834 = vmax.f32 %v712, %v802
        %v835 = vmax.f32 %v715, %v803
        %v836 = vmax.f32 %v720, %v804
        %v837 = vmax.f32 %v723, %v805
        %v838 = vmax.f32 %v728, %v806
        %v839 = vmax.f32 %v731, %v807
        %v840 = vmax.f32 %v736, %v808
        %v841 = vmax.f32 %v739, %v809
        %v842 = vmax.f32 %v744, %v810
        %v843 = vmax.f32 %v747, %v811
        %v844 = vmax.f32 %v752, %v812
        %v845 = vmax.f32 %v755, %v813
        %v846 = vmax.f32 %v760, %v814
        %v847 = vmax.f32 %v763, %v815
        %v848 = vmax.f32 %v768, %v816
        %v849 = vmax.f32 %v771, %v817
        %v850 = vmax.f32 %v776, %v818
        %v851 = vmax.f32 %v779, %v819
        %v852 = vmax.f32 %v784, %v820
        %v853 = vmax.f32 %v787, %v821
        %p854 = scmp.gt.s32.totalorder %s34, 0
        %s855 = scalar_select %p854, 1.0, 0.0
        %p856 = scmp.lt.s32.totalorder %s34, 0
        %s857 = scalar_select %p856, 1.0, 0.0
        %v858 = vld [vmem:[%s387] sm:$0xf]
        %v859 = vld [vmem:[%s387 + $0x4] sm:$0xf]
        %v862 = vunpack.c.l.b16 %v858
        %v863 = vunpack.c.l.b16 %v859
        %v864 = vpack.c.b16 %v863, %v862
        %v866 = vsel %vm576, %v864, 0
        %868 = vmatprep.subr.bf16.mxu0 0
        %869 = vmatpush1.bf16.msra.mxu0 %v627
        %870 = vmatprep.subr.bf16.mxu0 0
        %871 = vmatpush1.bf16.msra.mxu0 0
        %872 = vmatprep.subr.bf16.mxu0 0
        %873 = vmatpush1.bf16.msra.mxu0 0
        %874 = vmatprep.subr.bf16.mxu0 0
        %875 = vmatpush1.bf16.msra.mxu0 0
        %876 = vmatprep.subr.bf16.mxu0 0
        %877 = vmatpush1.bf16.msra.mxu0 0
        %878 = vmatprep.subr.bf16.mxu0 0
        %879 = vmatpush1.bf16.msra.mxu0 0
        %880 = vmatprep.subr.bf16.mxu0 0
        %881 = vmatpush1.bf16.msra.mxu0 0
        %882 = vmatprep.subr.bf16.mxu0 0
        %883 = vmatpush1.bf16.msra.mxu0 0
        %884 = vmatprep.subr.bf16.mxu0 0
        %885 = vmatpush1.bf16.msra.mxu0 0
        %886 = vmatprep.subr.bf16.mxu0 0
        %887 = vmatpush1.bf16.msra.mxu0 0
        %888 = vmatprep.subr.bf16.mxu0 0
        %889 = vmatpush1.bf16.msra.mxu0 0
        %890 = vmatprep.subr.bf16.mxu0 0
        %891 = vmatpush1.bf16.msra.mxu0 0
        %892 = vmatprep.subr.bf16.mxu0 0
        %893 = vmatpush1.bf16.msra.mxu0 0
        %894 = vmatprep.subr.bf16.mxu0 0
        %895 = vmatpush1.bf16.msra.mxu0 0
        %896 = vmatprep.subr.bf16.mxu0 0
        %897 = vmatpush1.bf16.msra.mxu0 0
        %898 = vmatprep.subr.bf16.mxu0 0
        %899 = vmatpush1.bf16.msra.mxu0 0
        %900 = vmatprep.mubr.bf16.mxu0 0
        %901 = vmatmul.mubr.bf16.gmra.mrb[0].mxu0 %v866
        %v902 = vpop.f32.mrb[0].mxu0
        %v903 = vadd.f32 %v494, %v902
        %v904 = vpop.f32.mrb[0].mxu0
        %v905 = vpop.f32.mrb[0].mxu0
        %v906 = vadd.f32 %v494, %v905
        %v907 = vpop.f32.mrb[0].mxu0
        %908 = vdwg.mxu0
        %v909 = vmul.f32 %v903, 0.1
        %v910 = vmul.f32 %v906, 0.1
        %v911 = vmax.f32 %v903, %v909
        %v912 = vmax.f32 %v906, %v910
        %v913 = vstv %s855
        %v914 = vmul.f32 %v911, %v913
        %v915 = vmul.f32 %v912, %v913
        %v916 = vld [vmem:[%s396] sm:$0xf]
        %v917 = vld [vmem:[%s396 + $0x4] sm:$0xf]
        %v920 = vunpack.c.l.b16 %v916
        %v921 = vunpack.c.l.b16 %v917
        %v922 = vpack.c.b16 %v921, %v920
        %v924 = vsel %vm576, %v922, 0
        %926 = vmatprep.subr.bf16.mxu0 0
        %927 = vmatpush1.bf16.msra.mxu0 %v627
        %928 = vmatprep.subr.bf16.mxu0 0
        %929 = vmatpush1.bf16.msra.mxu0 0
        %930 = vmatprep.subr.bf16.mxu0 0
        %931 = vmatpush1.bf16.msra.mxu0 0
        %932 = vmatprep.subr.bf16.mxu0 0
        %933 = vmatpush1.bf16.msra.mxu0 0
        %934 = vmatprep.subr.bf16.mxu0 0
        %935 = vmatpush1.bf16.msra.mxu0 0
        %936 = vmatprep.subr.bf16.mxu0 0
        %937 = vmatpush1.bf16.msra.mxu0 0
        %938 = vmatprep.subr.bf16.mxu0 0
        %939 = vmatpush1.bf16.msra.mxu0 0
        %940 = vmatprep.subr.bf16.mxu0 0
        %941 = vmatpush1.bf16.msra.mxu0 0
        %942 = vmatprep.subr.bf16.mxu0 0
        %943 = vmatpush1.bf16.msra.mxu0 0
        %944 = vmatprep.subr.bf16.mxu0 0
        %945 = vmatpush1.bf16.msra.mxu0 0
        %946 = vmatprep.subr.bf16.mxu0 0
        %947 = vmatpush1.bf16.msra.mxu0 0
        %948 = vmatprep.subr.bf16.mxu0 0
        %949 = vmatpush1.bf16.msra.mxu0 0
        %950 = vmatprep.subr.bf16.mxu0 0
        %951 = vmatpush1.bf16.msra.mxu0 0
        %952 = vmatprep.subr.bf16.mxu0 0
        %953 = vmatpush1.bf16.msra.mxu0 0
        %954 = vmatprep.subr.bf16.mxu0 0
        %955 = vmatpush1.bf16.msra.mxu0 0
        %956 = vmatprep.subr.bf16.mxu0 0
        %957 = vmatpush1.bf16.msra.mxu0 0
        %958 = vmatprep.mubr.bf16.mxu0 0
        %959 = vmatmul.mubr.bf16.gmra.mrb[0].mxu0 %v924
        %v960 = vpop.f32.mrb[0].mxu0
        %v961 = vadd.f32 %v494, %v960
        %v962 = vpop.f32.mrb[0].mxu0
        %v963 = vpop.f32.mrb[0].mxu0
        %v964 = vadd.f32 %v494, %v963
        %v965 = vpop.f32.mrb[0].mxu0
        %966 = vdwg.mxu0
        %v967 = vmul.f32 %v961, 0.1
        %v968 = vmul.f32 %v964, 0.1
        %v969 = vmax.f32 %v961, %v967
        %v970 = vmax.f32 %v964, %v968
        %v971 = vstv %s857
        %v972 = vmul.f32 %v969, %v971
        %v973 = vmul.f32 %v970, %v971
        %v974 = vpack.c.bf16 %v915, %v914
        %v975 = vpack.c.bf16 %v823, %v822
        %v976 = vpack.c.bf16 %v825, %v824
        %v977 = vpack.c.bf16 %v827, %v826
        %v978 = vpack.c.bf16 %v829, %v828
        %v979 = vpack.c.bf16 %v831, %v830
        %v980 = vpack.c.bf16 %v833, %v832
        %v981 = vpack.c.bf16 %v835, %v834
        %v982 = vpack.c.bf16 %v837, %v836
        %v983 = vpack.c.bf16 %v839, %v838
        %v984 = vpack.c.bf16 %v841, %v840
        %v985 = vpack.c.bf16 %v843, %v842
        %v986 = vpack.c.bf16 %v845, %v844
        %v987 = vpack.c.bf16 %v847, %v846
        %v988 = vpack.c.bf16 %v849, %v848
        %v989 = vpack.c.bf16 %v851, %v850
        %v990 = vpack.c.bf16 %v853, %v852
        %v991 = vpack.c.bf16 %v973, %v972
        %v993 = vshrl.u32 %v974, 16
        %v995 = vrot.slane %v993, 7
        %v996 = vshll.u32 %v974, 16
        %v998 = vor.u32 %v995, %v996
        %v1000 = vshrl.u32 %v975, 16
        %v1002 = vrot.slane %v1000, 7
        %v1003 = vshll.u32 %v975, 16
        %v1005 = vor.u32 %v1002, %v1003
        %v1007 = vshrl.u32 %v976, 16
        %v1009 = vrot.slane %v1007, 7
        %v1010 = vshll.u32 %v976, 16
        %v1012 = vor.u32 %v1009, %v1010
        %v1014 = vshrl.u32 %v977, 16
        %v1016 = vrot.slane %v1014, 7
        %v1017 = vshll.u32 %v977, 16
        %v1019 = vor.u32 %v1016, %v1017
        %v1021 = vshrl.u32 %v978, 16
        %v1023 = vrot.slane %v1021, 7
        %v1024 = vshll.u32 %v978, 16
        %v1026 = vor.u32 %v1023, %v1024
        %v1028 = vshrl.u32 %v979, 16
        %v1030 = vrot.slane %v1028, 7
        %v1031 = vshll.u32 %v979, 16
        %v1033 = vor.u32 %v1030, %v1031
        %v1035 = vshrl.u32 %v980, 16
        %v1037 = vrot.slane %v1035, 7
        %v1038 = vshll.u32 %v980, 16
        %v1040 = vor.u32 %v1037, %v1038
        %v1042 = vshrl.u32 %v981, 16
        %v1044 = vrot.slane %v1042, 7
        %v1045 = vshll.u32 %v981, 16
        %v1047 = vor.u32 %v1044, %v1045
        %v1049 = vshrl.u32 %v982, 16
        %v1051 = vrot.slane %v1049, 7
        %v1052 = vshll.u32 %v982, 16
        %v1054 = vor.u32 %v1051, %v1052
        %v1056 = vshrl.u32 %v983, 16
        %v1058 = vrot.slane %v1056, 7
        %v1059 = vshll.u32 %v983, 16
        %v1061 = vor.u32 %v1058, %v1059
        %v1063 = vshrl.u32 %v984, 16
        %v1065 = vrot.slane %v1063, 7
        %v1066 = vshll.u32 %v984, 16
        %v1068 = vor.u32 %v1065, %v1066
        %v1070 = vshrl.u32 %v985, 16
        %v1072 = vrot.slane %v1070, 7
        %v1073 = vshll.u32 %v985, 16
        %v1075 = vor.u32 %v1072, %v1073
        %v1077 = vshrl.u32 %v986, 16
        %v1079 = vrot.slane %v1077, 7
        %v1080 = vshll.u32 %v986, 16
        %v1082 = vor.u32 %v1079, %v1080
        %v1084 = vshrl.u32 %v987, 16
        %v1086 = vrot.slane %v1084, 7
        %v1087 = vshll.u32 %v987, 16
        %v1089 = vor.u32 %v1086, %v1087
        %v1091 = vshrl.u32 %v988, 16
        %v1093 = vrot.slane %v1091, 7
        %v1094 = vshll.u32 %v988, 16
        %v1096 = vor.u32 %v1093, %v1094
        %v1098 = vshrl.u32 %v989, 16
        %v1100 = vrot.slane %v1098, 7
        %v1101 = vshll.u32 %v989, 16
        %v1103 = vor.u32 %v1100, %v1101
        %v1105 = vshrl.u32 %v990, 16
        %v1107 = vrot.slane %v1105, 7
        %v1108 = vshll.u32 %v990, 16
        %v1110 = vor.u32 %v1107, %v1108
        %v1112 = vshrl.u32 %v991, 16
        %v1114 = vrot.slane %v1112, 7
        %v1115 = vshll.u32 %v991, 16
        %v1117 = vor.u32 %v1114, %v1115
        %vm1136 = vcmask 1040384
        %vm1137 = vsmask.f32 256
        %vm1138 = vmand %vm1136, %vm1137
        %v1139 = vsel %vm1138, 0, %v998
        %v1140 = vsel %vm1138, 0, %v1005
        %v1141 = vsel %vm1138, 0, %v1012
        %v1142 = vsel %vm1138, 0, %v1019
        %v1143 = vsel %vm1138, 0, %v1026
        %v1144 = vsel %vm1138, 0, %v1033
        %v1145 = vsel %vm1138, 0, %v1040
        %v1146 = vsel %vm1138, 0, %v1047
        %v1147 = vsel %vm1138, 0, %v1054
        %v1148 = vsel %vm1138, 0, %v1061
        %v1149 = vsel %vm1138, 0, %v1068
        %v1150 = vsel %vm1138, 0, %v1075
        %v1151 = vsel %vm1138, 0, %v1082
        %v1152 = vsel %vm1138, 0, %v1089
        %v1153 = vsel %vm1138, 0, %v1096
        %v1154 = vsel %vm1138, 0, %v1103
        %v1155 = vsel %vm1138, 0, %v1110
        %v1156 = vsel %vm1138, 0, %v1117
        %v1157 = vrot.slane %v996, 1
        %v1158 = vor.u32 %v993, %v1157
        %v1159 = vrot.slane %v1003, 1
        %v1160 = vor.u32 %v1000, %v1159
        %v1161 = vrot.slane %v1010, 1
        %v1162 = vor.u32 %v1007, %v1161
        %v1163 = vrot.slane %v1017, 1
        %v1164 = vor.u32 %v1014, %v1163
        %v1165 = vrot.slane %v1024, 1
        %v1166 = vor.u32 %v1021, %v1165
        %v1167 = vrot.slane %v1031, 1
        %v1168 = vor.u32 %v1028, %v1167
        %v1169 = vrot.slane %v1038, 1
        %v1170 = vor.u32 %v1035, %v1169
        %v1171 = vrot.slane %v1045, 1
        %v1172 = vor.u32 %v1042, %v1171
        %v1173 = vrot.slane %v1052, 1
        %v1174 = vor.u32 %v1049, %v1173
        %v1175 = vrot.slane %v1059, 1
        %v1176 = vor.u32 %v1056, %v1175
        %v1177 = vrot.slane %v1066, 1
        %v1178 = vor.u32 %v1063, %v1177
        %v1179 = vrot.slane %v1073, 1
        %v1180 = vor.u32 %v1070, %v1179
        %v1181 = vrot.slane %v1080, 1
        %v1182 = vor.u32 %v1077, %v1181
        %v1183 = vrot.slane %v1087, 1
        %v1184 = vor.u32 %v1084, %v1183
        %v1185 = vrot.slane %v1094, 1
        %v1186 = vor.u32 %v1091, %v1185
        %v1187 = vrot.slane %v1101, 1
        %v1188 = vor.u32 %v1098, %v1187
        %v1189 = vrot.slane %v1108, 1
        %v1190 = vor.u32 %v1105, %v1189
        %v1191 = vrot.slane %v1115, 1
        %v1192 = vor.u32 %v1112, %v1191
        %vm1211 = vcmask 1047552
        %vm1212 = vsmask.f32 7424
        %vm1213 = vmand %vm1211, %vm1212
        %v1214 = vsel %vm1213, %v1158, 0
        %v1215 = vsel %vm1213, %v1160, 0
        %v1216 = vsel %vm1213, %v1162, 0
        %v1217 = vsel %vm1213, %v1164, 0
        %v1218 = vsel %vm1213, %v1166, 0
        %v1219 = vsel %vm1213, %v1168, 0
        %v1220 = vsel %vm1213, %v1170, 0
        %v1221 = vsel %vm1213, %v1172, 0
        %v1222 = vsel %vm1213, %v1174, 0
        %v1223 = vsel %vm1213, %v1176, 0
        %v1224 = vsel %vm1213, %v1178, 0
        %v1225 = vsel %vm1213, %v1180, 0
        %v1226 = vsel %vm1213, %v1182, 0
        %v1227 = vsel %vm1213, %v1184, 0
        %v1228 = vsel %vm1213, %v1186, 0
        %v1229 = vsel %vm1213, %v1188, 0
        %v1230 = vsel %vm1213, %v1190, 0
        %v1231 = vsel %vm1213, %v1192, 0
        %1250 = vrot.lane.b32.xlu0 %v974, 2
        %v1251 = vpop.permute.xlu0 %1250
        %1252 = vrot.lane.b32.xlu0 %v975, 2
        %v1253 = vpop.permute.xlu0 %1252
        %1254 = vrot.lane.b32.xlu0 %v976, 2
        %v1255 = vpop.permute.xlu0 %1254
        %1256 = vrot.lane.b32.xlu0 %v977, 2
        %v1257 = vpop.permute.xlu0 %1256
        %1258 = vrot.lane.b32.xlu0 %v978, 2
        %v1259 = vpop.permute.xlu0 %1258
        %1260 = vrot.lane.b32.xlu0 %v979, 2
        %v1261 = vpop.permute.xlu0 %1260
        %1262 = vrot.lane.b32.xlu0 %v980, 2
        %v1263 = vpop.permute.xlu0 %1262
        %1264 = vrot.lane.b32.xlu0 %v981, 2
        %v1265 = vpop.permute.xlu0 %1264
        %1266 = vrot.lane.b32.xlu0 %v982, 2
        %v1267 = vpop.permute.xlu0 %1266
        %1268 = vrot.lane.b32.xlu0 %v983, 2
        %v1269 = vpop.permute.xlu0 %1268
        %1270 = vrot.lane.b32.xlu0 %v984, 2
        %v1271 = vpop.permute.xlu0 %1270
        %1272 = vrot.lane.b32.xlu0 %v985, 2
        %v1273 = vpop.permute.xlu0 %1272
        %1274 = vrot.lane.b32.xlu0 %v986, 2
        %v1275 = vpop.permute.xlu0 %1274
        %1276 = vrot.lane.b32.xlu0 %v987, 2
        %v1277 = vpop.permute.xlu0 %1276
        %1278 = vrot.lane.b32.xlu0 %v988, 2
        %v1279 = vpop.permute.xlu0 %1278
        %1280 = vrot.lane.b32.xlu0 %v989, 2
        %v1281 = vpop.permute.xlu0 %1280
        %1282 = vrot.lane.b32.xlu0 %v990, 2
        %v1283 = vpop.permute.xlu0 %1282
        %1284 = vrot.lane.b32.xlu0 %v991, 2
        %v1285 = vpop.permute.xlu0 %1284
        %1304 = vrot.lane.b32.xlu0 %v1214, 4
        %v1305 = vpop.permute.xlu0 %1304
        %1306 = vrot.lane.b32.xlu0 %v1215, 4
        %v1307 = vpop.permute.xlu0 %1306
        %1308 = vrot.lane.b32.xlu0 %v1216, 4
        %v1309 = vpop.permute.xlu0 %1308
        %1310 = vrot.lane.b32.xlu0 %v1217, 4
        %v1311 = vpop.permute.xlu0 %1310
        %1312 = vrot.lane.b32.xlu0 %v1218, 4
        %v1313 = vpop.permute.xlu0 %1312
        %1314 = vrot.lane.b32.xlu0 %v1219, 4
        %v1315 = vpop.permute.xlu0 %1314
        %1316 = vrot.lane.b32.xlu0 %v1220, 4
        %v1317 = vpop.permute.xlu0 %1316
        %1318 = vrot.lane.b32.xlu0 %v1221, 4
        %v1319 = vpop.permute.xlu0 %1318
        %1320 = vrot.lane.b32.xlu0 %v1222, 4
        %v1321 = vpop.permute.xlu0 %1320
        %1322 = vrot.lane.b32.xlu0 %v1223, 4
        %v1323 = vpop.permute.xlu0 %1322
        %1324 = vrot.lane.b32.xlu0 %v1224, 4
        %v1325 = vpop.permute.xlu0 %1324
        %1326 = vrot.lane.b32.xlu0 %v1225, 4
        %v1327 = vpop.permute.xlu0 %1326
        %1328 = vrot.lane.b32.xlu0 %v1226, 4
        %v1329 = vpop.permute.xlu0 %1328
        %1330 = vrot.lane.b32.xlu0 %v1227, 4
        %v1331 = vpop.permute.xlu0 %1330
        %1332 = vrot.lane.b32.xlu0 %v1228, 4
        %v1333 = vpop.permute.xlu0 %1332
        %1334 = vrot.lane.b32.xlu0 %v1229, 4
        %v1335 = vpop.permute.xlu0 %1334
        %1336 = vrot.lane.b32.xlu0 %v1230, 4
        %v1337 = vpop.permute.xlu0 %1336
        %1338 = vrot.lane.b32.xlu0 %v1231, 4
        %v1339 = vpop.permute.xlu0 %1338
        %vm1340 = vcmask 15360
        %v1343 = vsel %vm1340, %v1139, %v1251
        %v1346 = vsel %vm1340, %v1140, %v1253
        %v1349 = vsel %vm1340, %v1141, %v1255
        %v1352 = vsel %vm1340, %v1142, %v1257
        %v1355 = vsel %vm1340, %v1143, %v1259
        %v1358 = vsel %vm1340, %v1144, %v1261
        %v1361 = vsel %vm1340, %v1145, %v1263
        %v1364 = vsel %vm1340, %v1146, %v1265
        %v1367 = vsel %vm1340, %v1147, %v1267
        %v1370 = vsel %vm1340, %v1148, %v1269
        %v1373 = vsel %vm1340, %v1149, %v1271
        %v1376 = vsel %vm1340, %v1150, %v1273
        %v1379 = vsel %vm1340, %v1151, %v1275
        %v1382 = vsel %vm1340, %v1152, %v1277
        %v1385 = vsel %vm1340, %v1153, %v1279
        %v1388 = vsel %vm1340, %v1154, %v1281
        %v1391 = vsel %vm1340, %v1155, %v1283
        %v1394 = vsel %vm1340, %v1156, %v1285
        %v1396 = vsel %vm576, %v1343, %v1305
        %v1398 = vsel %vm576, %v1346, %v1307
        %v1400 = vsel %vm576, %v1349, %v1309
        %v1402 = vsel %vm576, %v1352, %v1311
        %v1404 = vsel %vm576, %v1355, %v1313
        %v1406 = vsel %vm576, %v1358, %v1315
        %v1408 = vsel %vm576, %v1361, %v1317
        %v1410 = vsel %vm576, %v1364, %v1319
        %v1412 = vsel %vm576, %v1367, %v1321
        %v1414 = vsel %vm576, %v1370, %v1323
        %v1416 = vsel %vm576, %v1373, %v1325
        %v1418 = vsel %vm576, %v1376, %v1327
        %v1420 = vsel %vm576, %v1379, %v1329
        %v1422 = vsel %vm576, %v1382, %v1331
        %v1424 = vsel %vm576, %v1385, %v1333
        %v1426 = vsel %vm576, %v1388, %v1335
        %v1428 = vsel %vm576, %v1391, %v1337
        %v1430 = vsel %vm576, %v1394, %v1339
        %v1431 = vld [vmem:[#allocation11] sm:$0x7]
        %s1432 = scalar_lea.vmem [#allocation11], 4
        %v1433 = vld [vmem:[%s1432] sm:$0x7]
        %vm1434 = vcmask 48128
        %v1435 = vsel %vm1434, %v1398, 0
        %v1437 = vsel %vm1434, %v1400, 0
        %v1439 = vsel %vm1434, %v1402, 0
        %v1441 = vsel %vm1434, %v1404, 0
        %v1443 = vsel %vm1434, %v1406, 0
        %v1445 = vsel %vm1434, %v1408, 0
        %v1447 = vsel %vm1434, %v1410, 0
        %v1449 = vsel %vm1434, %v1412, 0
        %v1451 = vsel %vm1434, %v1414, 0
        %v1453 = vsel %vm1434, %v1416, 0
        %v1455 = vsel %vm1434, %v1418, 0
        %v1457 = vsel %vm1434, %v1420, 0
        %v1459 = vsel %vm1434, %v1422, 0
        %v1461 = vsel %vm1434, %v1424, 0
        %v1463 = vsel %vm1434, %v1426, 0
        %v1465 = vsel %vm1434, %v1428, 0
        %vm1467 = vcmask 1042432
        %v1469 = vsel %vm1467, %v1433, 0
        %1471 = vmatprep.subr.bf16.mxu0 0
        %1472 = vmatpush1.bf16.msra.mxu0 %v1469
        %1473 = vmatprep.subr.bf16.mxu0 0
        %1474 = vmatpush1.bf16.msra.mxu0 0
        %1475 = vmatprep.subr.bf16.mxu0 0
        %1476 = vmatpush1.bf16.msra.mxu0 0
        %1477 = vmatprep.subr.bf16.mxu0 0
        %1478 = vmatpush1.bf16.msra.mxu0 0
        %1479 = vmatprep.subr.bf16.mxu0 0
        %1480 = vmatpush1.bf16.msra.mxu0 0
        %1481 = vmatprep.subr.bf16.mxu0 0
        %1482 = vmatpush1.bf16.msra.mxu0 0
        %1483 = vmatprep.subr.bf16.mxu0 0
        %1484 = vmatpush1.bf16.msra.mxu0 0
        %1485 = vmatprep.subr.bf16.mxu0 0
        %1486 = vmatpush1.bf16.msra.mxu0 0
        %1487 = vmatprep.subr.bf16.mxu0 0
        %1488 = vmatpush1.bf16.msra.mxu0 0
        %1489 = vmatprep.subr.bf16.mxu0 0
        %1490 = vmatpush1.bf16.msra.mxu0 0
        %1491 = vmatprep.subr.bf16.mxu0 0
        %1492 = vmatpush1.bf16.msra.mxu0 0
        %1493 = vmatprep.subr.bf16.mxu0 0
        %1494 = vmatpush1.bf16.msra.mxu0 0
        %1495 = vmatprep.subr.bf16.mxu0 0
        %1496 = vmatpush1.bf16.msra.mxu0 0
        %1497 = vmatprep.subr.bf16.mxu0 0
        %1498 = vmatpush1.bf16.msra.mxu0 0
        %1499 = vmatprep.subr.bf16.mxu0 0
        %1500 = vmatpush1.bf16.msra.mxu0 0
        %1501 = vmatprep.subr.bf16.mxu0 0
        %1502 = vmatpush1.bf16.msra.mxu0 0
        %1503 = vmatprep.mubr.bf16.mxu0 0
        %1504 = vmatmul.mubr.bf16.gmra.mrb[0].mxu0 %v1435
        %v1505 = vpop.f32.mrb[0].mxu0
        %v1506 = vadd.f32 0.0, %v1505
        %v1507 = vpop.f32.mrb[0].mxu0
        %v1508 = vpop.f32.mrb[0].mxu0
        %v1509 = vadd.f32 0.0, %v1508
        %v1510 = vpop.f32.mrb[0].mxu0
        %1511 = vmatprep.mubr.bf16.mxu0 0
        %1512 = vmatmul.mubr.bf16.gmra.mrb[0].mxu0 %v1437
        %v1513 = vpop.f32.mrb[0].mxu0
        %v1514 = vadd.f32 0.0, %v1513
        %v1515 = vpop.f32.mrb[0].mxu0
        %v1516 = vpop.f32.mrb[0].mxu0
        %v1517 = vadd.f32 0.0, %v1516
        %v1518 = vpop.f32.mrb[0].mxu0
        %1519 = vmatprep.mubr.bf16.mxu0 0
        %1520 = vmatmul.mubr.bf16.gmra.mrb[0].mxu0 %v1439
        %v1521 = vpop.f32.mrb[0].mxu0
        %v1522 = vadd.f32 0.0, %v1521
        %v1523 = vpop.f32.mrb[0].mxu0
        %v1524 = vpop.f32.mrb[0].mxu0
        %v1525 = vadd.f32 0.0, %v1524
        %v1526 = vpop.f32.mrb[0].mxu0
        %1527 = vmatprep.mubr.bf16.mxu0 0
        %1528 = vmatmul.mubr.bf16.gmra.mrb[0].mxu0 %v1441
        %v1529 = vpop.f32.mrb[0].mxu0
        %v1530 = vadd.f32 0.0, %v1529
        %v1531 = vpop.f32.mrb[0].mxu0
        %v1532 = vpop.f32.mrb[0].mxu0
        %v1533 = vadd.f32 0.0, %v1532
        %v1534 = vpop.f32.mrb[0].mxu0
        %1535 = vmatprep.mubr.bf16.mxu0 0
        %1536 = vmatmul.mubr.bf16.gmra.mrb[0].mxu0 %v1443
        %v1537 = vpop.f32.mrb[0].mxu0
        %v1538 = vadd.f32 0.0, %v1537
        %v1539 = vpop.f32.mrb[0].mxu0
        %v1540 = vpop.f32.mrb[0].mxu0
        %v1541 = vadd.f32 0.0, %v1540
        %v1542 = vpop.f32.mrb[0].mxu0
        %1543 = vmatprep.mubr.bf16.mxu0 0
        %1544 = vmatmul.mubr.bf16.gmra.mrb[0].mxu0 %v1445
        %v1545 = vpop.f32.mrb[0].mxu0
        %v1546 = vadd.f32 0.0, %v1545
        %v1547 = vpop.f32.mrb[0].mxu0
        %v1548 = vpop.f32.mrb[0].mxu0
        %v1549 = vadd.f32 0.0, %v1548
        %v1550 = vpop.f32.mrb[0].mxu0
        %1551 = vmatprep.mubr.bf16.mxu0 0
        %1552 = vmatmul.mubr.bf16.gmra.mrb[0].mxu0 %v1447
        %v1553 = vpop.f32.mrb[0].mxu0
        %v1554 = vadd.f32 0.0, %v1553
        %v1555 = vpop.f32.mrb[0].mxu0
        %v1556 = vpop.f32.mrb[0].mxu0
        %v1557 = vadd.f32 0.0, %v1556
        %v1558 = vpop.f32.mrb[0].mxu0
        %1559 = vmatprep.mubr.bf16.mxu0 0
        %1560 = vmatmul.mubr.bf16.gmra.mrb[0].mxu0 %v1449
        %v1561 = vpop.f32.mrb[0].mxu0
        %v1562 = vadd.f32 0.0, %v1561
        %v1563 = vpop.f32.mrb[0].mxu0
        %v1564 = vpop.f32.mrb[0].mxu0
        %v1565 = vadd.f32 0.0, %v1564
        %v1566 = vpop.f32.mrb[0].mxu0
        %1567 = vmatprep.mubr.bf16.mxu0 0
        %1568 = vmatmul.mubr.bf16.gmra.mrb[0].mxu0 %v1451
        %v1569 = vpop.f32.mrb[0].mxu0
        %v1570 = vadd.f32 0.0, %v1569
        %v1571 = vpop.f32.mrb[0].mxu0
        %v1572 = vpop.f32.mrb[0].mxu0
        %v1573 = vadd.f32 0.0, %v1572
        %v1574 = vpop.f32.mrb[0].mxu0
        %1575 = vmatprep.mubr.bf16.mxu0 0
        %1576 = vmatmul.mubr.bf16.gmra.mrb[0].mxu0 %v1453
        %v1577 = vpop.f32.mrb[0].mxu0
        %v1578 = vadd.f32 0.0, %v1577
        %v1579 = vpop.f32.mrb[0].mxu0
        %v1580 = vpop.f32.mrb[0].mxu0
        %v1581 = vadd.f32 0.0, %v1580
        %v1582 = vpop.f32.mrb[0].mxu0
        %1583 = vmatprep.mubr.bf16.mxu0 0
        %1584 = vmatmul.mubr.bf16.gmra.mrb[0].mxu0 %v1455
        %v1585 = vpop.f32.mrb[0].mxu0
        %v1586 = vadd.f32 0.0, %v1585
        %v1587 = vpop.f32.mrb[0].mxu0
        %v1588 = vpop.f32.mrb[0].mxu0
        %v1589 = vadd.f32 0.0, %v1588
        %v1590 = vpop.f32.mrb[0].mxu0
        %1591 = vmatprep.mubr.bf16.mxu0 0
        %1592 = vmatmul.mubr.bf16.gmra.mrb[0].mxu0 %v1457
        %v1593 = vpop.f32.mrb[0].mxu0
        %v1594 = vadd.f32 0.0, %v1593
        %v1595 = vpop.f32.mrb[0].mxu0
        %v1596 = vpop.f32.mrb[0].mxu0
        %v1597 = vadd.f32 0.0, %v1596
        %v1598 = vpop.f32.mrb[0].mxu0
        %1599 = vmatprep.mubr.bf16.mxu0 0
        %1600 = vmatmul.mubr.bf16.gmra.mrb[0].mxu0 %v1459
        %v1601 = vpop.f32.mrb[0].mxu0
        %v1602 = vadd.f32 0.0, %v1601
        %v1603 = vpop.f32.mrb[0].mxu0
        %v1604 = vpop.f32.mrb[0].mxu0
        %v1605 = vadd.f32 0.0, %v1604
        %v1606 = vpop.f32.mrb[0].mxu0
        %1607 = vmatprep.mubr.bf16.mxu0 0
        %1608 = vmatmul.mubr.bf16.gmra.mrb[0].mxu0 %v1461
        %v1609 = vpop.f32.mrb[0].mxu0
        %v1610 = vadd.f32 0.0, %v1609
        %v1611 = vpop.f32.mrb[0].mxu0
        %v1612 = vpop.f32.mrb[0].mxu0
        %v1613 = vadd.f32 0.0, %v1612
        %v1614 = vpop.f32.mrb[0].mxu0
        %1615 = vmatprep.mubr.bf16.mxu0 0
        %1616 = vmatmul.mubr.bf16.gmra.mrb[0].mxu0 %v1463
        %v1617 = vpop.f32.mrb[0].mxu0
        %v1618 = vadd.f32 0.0, %v1617
        %v1619 = vpop.f32.mrb[0].mxu0
        %v1620 = vpop.f32.mrb[0].mxu0
        %v1621 = vadd.f32 0.0, %v1620
        %v1622 = vpop.f32.mrb[0].mxu0
        %1623 = vmatprep.mubr.bf16.mxu0 0
        %1624 = vmatmul.mubr.bf16.gmra.mrb[0].mxu0 %v1465
        %v1625 = vpop.f32.mrb[0].mxu0
        %v1626 = vadd.f32 0.0, %v1625
        %v1627 = vpop.f32.mrb[0].mxu0
        %v1628 = vpop.f32.mrb[0].mxu0
        %v1629 = vadd.f32 0.0, %v1628
        %v1630 = vpop.f32.mrb[0].mxu0
        %1631 = vdwg.mxu0
        %v1632 = vsel %vm1434, %v1396, 0
        %v1635 = vsel %vm1467, %v1431, 0
        %1637 = vmatprep.subr.bf16.mxu0 0
        %1638 = vmatpush1.bf16.msra.mxu0 %v1635
        %1639 = vmatprep.subr.bf16.mxu0 0
        %1640 = vmatpush1.bf16.msra.mxu0 0
        %1641 = vmatprep.subr.bf16.mxu0 0
        %1642 = vmatpush1.bf16.msra.mxu0 0
        %1643 = vmatprep.subr.bf16.mxu0 0
        %1644 = vmatpush1.bf16.msra.mxu0 0
        %1645 = vmatprep.subr.bf16.mxu0 0
        %1646 = vmatpush1.bf16.msra.mxu0 0
        %1647 = vmatprep.subr.bf16.mxu0 0
        %1648 = vmatpush1.bf16.msra.mxu0 0
        %1649 = vmatprep.subr.bf16.mxu0 0
        %1650 = vmatpush1.bf16.msra.mxu0 0
        %1651 = vmatprep.subr.bf16.mxu0 0
        %1652 = vmatpush1.bf16.msra.mxu0 0
        %1653 = vmatprep.subr.bf16.mxu0 0
        %1654 = vmatpush1.bf16.msra.mxu0 0
        %1655 = vmatprep.subr.bf16.mxu0 0
        %1656 = vmatpush1.bf16.msra.mxu0 0
        %1657 = vmatprep.subr.bf16.mxu0 0
        %1658 = vmatpush1.bf16.msra.mxu0 0
        %1659 = vmatprep.subr.bf16.mxu0 0
        %1660 = vmatpush1.bf16.msra.mxu0 0
        %1661 = vmatprep.subr.bf16.mxu0 0
        %1662 = vmatpush1.bf16.msra.mxu0 0
        %1663 = vmatprep.subr.bf16.mxu0 0
        %1664 = vmatpush1.bf16.msra.mxu0 0
        %1665 = vmatprep.subr.bf16.mxu0 0
        %1666 = vmatpush1.bf16.msra.mxu0 0
        %1667 = vmatprep.subr.bf16.mxu0 0
        %1668 = vmatpush1.bf16.msra.mxu0 0
        %1669 = vmatprep.mubr.bf16.mxu0 0
        %1670 = vmatmul.mubr.bf16.gmra.mrb[0].mxu0 %v1632
        %v1671 = vpop.f32.mrb[0].mxu0
        %v1672 = vadd.f32 %v1506, %v1671
        %v1673 = vpop.f32.mrb[0].mxu0
        %v1674 = vpop.f32.mrb[0].mxu0
        %v1675 = vadd.f32 %v1509, %v1674
        %v1676 = vpop.f32.mrb[0].mxu0
        %1677 = vmatprep.mubr.bf16.mxu0 0
        %1678 = vmatmul.mubr.bf16.gmra.mrb[0].mxu0 %v1435
        %v1679 = vpop.f32.mrb[0].mxu0
        %v1680 = vadd.f32 %v1514, %v1679
        %v1681 = vpop.f32.mrb[0].mxu0
        %v1682 = vpop.f32.mrb[0].mxu0
        %v1683 = vadd.f32 %v1517, %v1682
        %v1684 = vpop.f32.mrb[0].mxu0
        %1685 = vmatprep.mubr.bf16.mxu0 0
        %1686 = vmatmul.mubr.bf16.gmra.mrb[0].mxu0 %v1437
        %v1687 = vpop.f32.mrb[0].mxu0
        %v1688 = vadd.f32 %v1522, %v1687
        %v1689 = vpop.f32.mrb[0].mxu0
        %v1690 = vpop.f32.mrb[0].mxu0
        %v1691 = vadd.f32 %v1525, %v1690
        %v1692 = vpop.f32.mrb[0].mxu0
        %1693 = vmatprep.mubr.bf16.mxu0 0
        %1694 = vmatmul.mubr.bf16.gmra.mrb[0].mxu0 %v1439
        %v1695 = vpop.f32.mrb[0].mxu0
        %v1696 = vadd.f32 %v1530, %v1695
        %v1697 = vpop.f32.mrb[0].mxu0
        %v1698 = vpop.f32.mrb[0].mxu0
        %v1699 = vadd.f32 %v1533, %v1698
        %v1700 = vpop.f32.mrb[0].mxu0
        %1701 = vmatprep.mubr.bf16.mxu0 0
        %1702 = vmatmul.mubr.bf16.gmra.mrb[0].mxu0 %v1441
        %v1703 = vpop.f32.mrb[0].mxu0
        %v1704 = vadd.f32 %v1538, %v1703
        %v1705 = vpop.f32.mrb[0].mxu0
        %v1706 = vpop.f32.mrb[0].mxu0
        %v1707 = vadd.f32 %v1541, %v1706
        %v1708 = vpop.f32.mrb[0].mxu0
        %1709 = vmatprep.mubr.bf16.mxu0 0
        %1710 = vmatmul.mubr.bf16.gmra.mrb[0].mxu0 %v1443
        %v1711 = vpop.f32.mrb[0].mxu0
        %v1712 = vadd.f32 %v1546, %v1711
        %v1713 = vpop.f32.mrb[0].mxu0
        %v1714 = vpop.f32.mrb[0].mxu0
        %v1715 = vadd.f32 %v1549, %v1714
        %v1716 = vpop.f32.mrb[0].mxu0
        %1717 = vmatprep.mubr.bf16.mxu0 0
        %1718 = vmatmul.mubr.bf16.gmra.mrb[0].mxu0 %v1445
        %v1719 = vpop.f32.mrb[0].mxu0
        %v1720 = vadd.f32 %v1554, %v1719
        %v1721 = vpop.f32.mrb[0].mxu0
        %v1722 = vpop.f32.mrb[0].mxu0
        %v1723 = vadd.f32 %v1557, %v1722
        %v1724 = vpop.f32.mrb[0].mxu0
        %1725 = vmatprep.mubr.bf16.mxu0 0
        %1726 = vmatmul.mubr.bf16.gmra.mrb[0].mxu0 %v1447
        %v1727 = vpop.f32.mrb[0].mxu0
        %v1728 = vadd.f32 %v1562, %v1727
        %v1729 = vpop.f32.mrb[0].mxu0
        %v1730 = vpop.f32.mrb[0].mxu0
        %v1731 = vadd.f32 %v1565, %v1730
        %v1732 = vpop.f32.mrb[0].mxu0
        %1733 = vmatprep.mubr.bf16.mxu0 0
        %1734 = vmatmul.mubr.bf16.gmra.mrb[0].mxu0 %v1449
        %v1735 = vpop.f32.mrb[0].mxu0
        %v1736 = vadd.f32 %v1570, %v1735
        %v1737 = vpop.f32.mrb[0].mxu0
        %v1738 = vpop.f32.mrb[0].mxu0
        %v1739 = vadd.f32 %v1573, %v1738
        %v1740 = vpop.f32.mrb[0].mxu0
        %1741 = vmatprep.mubr.bf16.mxu0 0
        %1742 = vmatmul.mubr.bf16.gmra.mrb[0].mxu0 %v1451
        %v1743 = vpop.f32.mrb[0].mxu0
        %v1744 = vadd.f32 %v1578, %v1743
        %v1745 = vpop.f32.mrb[0].mxu0
        %v1746 = vpop.f32.mrb[0].mxu0
        %v1747 = vadd.f32 %v1581, %v1746
        %v1748 = vpop.f32.mrb[0].mxu0
        %1749 = vmatprep.mubr.bf16.mxu0 0
        %1750 = vmatmul.mubr.bf16.gmra.mrb[0].mxu0 %v1453
        %v1751 = vpop.f32.mrb[0].mxu0
        %v1752 = vadd.f32 %v1586, %v1751
        %v1753 = vpop.f32.mrb[0].mxu0
        %v1754 = vpop.f32.mrb[0].mxu0
        %v1755 = vadd.f32 %v1589, %v1754
        %v1756 = vpop.f32.mrb[0].mxu0
        %1757 = vmatprep.mubr.bf16.mxu0 0
        %1758 = vmatmul.mubr.bf16.gmra.mrb[0].mxu0 %v1455
        %v1759 = vpop.f32.mrb[0].mxu0
        %v1760 = vadd.f32 %v1594, %v1759
        %v1761 = vpop.f32.mrb[0].mxu0
        %v1762 = vpop.f32.mrb[0].mxu0
        %v1763 = vadd.f32 %v1597, %v1762
        %v1764 = vpop.f32.mrb[0].mxu0
        %1765 = vmatprep.mubr.bf16.mxu0 0
        %1766 = vmatmul.mubr.bf16.gmra.mrb[0].mxu0 %v1457
        %v1767 = vpop.f32.mrb[0].mxu0
        %v1768 = vadd.f32 %v1602, %v1767
        %v1769 = vpop.f32.mrb[0].mxu0
        %v1770 = vpop.f32.mrb[0].mxu0
        %v1771 = vadd.f32 %v1605, %v1770
        %v1772 = vpop.f32.mrb[0].mxu0
        %1773 = vmatprep.mubr.bf16.mxu0 0
        %1774 = vmatmul.mubr.bf16.gmra.mrb[0].mxu0 %v1459
        %v1775 = vpop.f32.mrb[0].mxu0
        %v1776 = vadd.f32 %v1610, %v1775
        %v1777 = vpop.f32.mrb[0].mxu0
        %v1778 = vpop.f32.mrb[0].mxu0
        %v1779 = vadd.f32 %v1613, %v1778
        %v1780 = vpop.f32.mrb[0].mxu0
        %1781 = vmatprep.mubr.bf16.mxu0 0
        %1782 = vmatmul.mubr.bf16.gmra.mrb[0].mxu0 %v1461
        %v1783 = vpop.f32.mrb[0].mxu0
        %v1784 = vadd.f32 %v1618, %v1783
        %v1785 = vpop.f32.mrb[0].mxu0
        %v1786 = vpop.f32.mrb[0].mxu0
        %v1787 = vadd.f32 %v1621, %v1786
        %v1788 = vpop.f32.mrb[0].mxu0
        %1789 = vmatprep.mubr.bf16.mxu0 0
        %1790 = vmatmul.mubr.bf16.gmra.mrb[0].mxu0 %v1463
        %v1791 = vpop.f32.mrb[0].mxu0
        %v1792 = vadd.f32 %v1626, %v1791
        %v1793 = vpop.f32.mrb[0].mxu0
        %v1794 = vpop.f32.mrb[0].mxu0
        %v1795 = vadd.f32 %v1629, %v1794
        %v1796 = vpop.f32.mrb[0].mxu0
        %1797 = vdwg.mxu0
        %s1798 = scalar_lea.vmem [#allocation11], 8
        %v1799 = vld [vmem:[%s1798] sm:$0x7]
        %v1800 = vsel %vm1434, %v1430, 0
        %v1803 = vsel %vm1467, %v1799, 0
        %1805 = vmatprep.subr.bf16.mxu0 0
        %1806 = vmatpush1.bf16.msra.mxu0 %v1803
        %1807 = vmatprep.subr.bf16.mxu0 0
        %1808 = vmatpush1.bf16.msra.mxu0 0
        %1809 = vmatprep.subr.bf16.mxu0 0
        %1810 = vmatpush1.bf16.msra.mxu0 0
        %1811 = vmatprep.subr.bf16.mxu0 0
        %1812 = vmatpush1.bf16.msra.mxu0 0
        %1813 = vmatprep.subr.bf16.mxu0 0
        %1814 = vmatpush1.bf16.msra.mxu0 0
        %1815 = vmatprep.subr.bf16.mxu0 0
        %1816 = vmatpush1.bf16.msra.mxu0 0
        %1817 = vmatprep.subr.bf16.mxu0 0
        %1818 = vmatpush1.bf16.msra.mxu0 0
        %1819 = vmatprep.subr.bf16.mxu0 0
        %1820 = vmatpush1.bf16.msra.mxu0 0
        %1821 = vmatprep.subr.bf16.mxu0 0
        %1822 = vmatpush1.bf16.msra.mxu0 0
        %1823 = vmatprep.subr.bf16.mxu0 0
        %1824 = vmatpush1.bf16.msra.mxu0 0
        %1825 = vmatprep.subr.bf16.mxu0 0
        %1826 = vmatpush1.bf16.msra.mxu0 0
        %1827 = vmatprep.subr.bf16.mxu0 0
        %1828 = vmatpush1.bf16.msra.mxu0 0
        %1829 = vmatprep.subr.bf16.mxu0 0
        %1830 = vmatpush1.bf16.msra.mxu0 0
        %1831 = vmatprep.subr.bf16.mxu0 0
        %1832 = vmatpush1.bf16.msra.mxu0 0
        %1833 = vmatprep.subr.bf16.mxu0 0
        %1834 = vmatpush1.bf16.msra.mxu0 0
        %1835 = vmatprep.subr.bf16.mxu0 0
        %1836 = vmatpush1.bf16.msra.mxu0 0
        %1837 = vmatprep.mubr.bf16.mxu0 0
        %1838 = vmatmul.mubr.bf16.gmra.mrb[0].mxu0 %v1437
        %v1839 = vpop.f32.mrb[0].mxu0
        %v1840 = vadd.f32 0.0, %v1839
        %v1841 = vpop.f32.mrb[0].mxu0
        %v1842 = vpop.f32.mrb[0].mxu0
        %v1843 = vadd.f32 0.0, %v1842
        %v1844 = vpop.f32.mrb[0].mxu0
        %1845 = vmatprep.mubr.bf16.mxu0 0
        %1846 = vmatmul.mubr.bf16.gmra.mrb[0].mxu0 %v1439
        %v1847 = vpop.f32.mrb[0].mxu0
        %v1848 = vadd.f32 0.0, %v1847
        %v1849 = vpop.f32.mrb[0].mxu0
        %v1850 = vpop.f32.mrb[0].mxu0
        %v1851 = vadd.f32 0.0, %v1850
        %v1852 = vpop.f32.mrb[0].mxu0
        %1853 = vmatprep.mubr.bf16.mxu0 0
        %1854 = vmatmul.mubr.bf16.gmra.mrb[0].mxu0 %v1441
        %v1855 = vpop.f32.mrb[0].mxu0
        %v1856 = vadd.f32 0.0, %v1855
        %v1857 = vpop.f32.mrb[0].mxu0
        %v1858 = vpop.f32.mrb[0].mxu0
        %v1859 = vadd.f32 0.0, %v1858
        %v1860 = vpop.f32.mrb[0].mxu0
        %1861 = vmatprep.mubr.bf16.mxu0 0
        %1862 = vmatmul.mubr.bf16.gmra.mrb[0].mxu0 %v1443
        %v1863 = vpop.f32.mrb[0].mxu0
        %v1864 = vadd.f32 0.0, %v1863
        %v1865 = vpop.f32.mrb[0].mxu0
        %v1866 = vpop.f32.mrb[0].mxu0
        %v1867 = vadd.f32 0.0, %v1866
        %v1868 = vpop.f32.mrb[0].mxu0
        %1869 = vmatprep.mubr.bf16.mxu0 0
        %1870 = vmatmul.mubr.bf16.gmra.mrb[0].mxu0 %v1445
        %v1871 = vpop.f32.mrb[0].mxu0
        %v1872 = vadd.f32 0.0, %v1871
        %v1873 = vpop.f32.mrb[0].mxu0
        %v1874 = vpop.f32.mrb[0].mxu0
        %v1875 = vadd.f32 0.0, %v1874
        %v1876 = vpop.f32.mrb[0].mxu0
        %1877 = vmatprep.mubr.bf16.mxu0 0
        %1878 = vmatmul.mubr.bf16.gmra.mrb[0].mxu0 %v1447
        %v1879 = vpop.f32.mrb[0].mxu0
        %v1880 = vadd.f32 0.0, %v1879
        %v1881 = vpop.f32.mrb[0].mxu0
        %v1882 = vpop.f32.mrb[0].mxu0
        %v1883 = vadd.f32 0.0, %v1882
        %v1884 = vpop.f32.mrb[0].mxu0
        %1885 = vmatprep.mubr.bf16.mxu0 0
        %1886 = vmatmul.mubr.bf16.gmra.mrb[0].mxu0 %v1449
        %v1887 = vpop.f32.mrb[0].mxu0
        %v1888 = vadd.f32 0.0, %v1887
        %v1889 = vpop.f32.mrb[0].mxu0
        %v1890 = vpop.f32.mrb[0].mxu0
        %v1891 = vadd.f32 0.0, %v1890
        %v1892 = vpop.f32.mrb[0].mxu0
        %1893 = vmatprep.mubr.bf16.mxu0 0
        %1894 = vmatmul.mubr.bf16.gmra.mrb[0].mxu0 %v1451
        %v1895 = vpop.f32.mrb[0].mxu0
        %v1896 = vadd.f32 0.0, %v1895
        %v1897 = vpop.f32.mrb[0].mxu0
        %v1898 = vpop.f32.mrb[0].mxu0
        %v1899 = vadd.f32 0.0, %v1898
        %v1900 = vpop.f32.mrb[0].mxu0
        %1901 = vmatprep.mubr.bf16.mxu0 0
        %1902 = vmatmul.mubr.bf16.gmra.mrb[0].mxu0 %v1453
        %v1903 = vpop.f32.mrb[0].mxu0
        %v1904 = vadd.f32 0.0, %v1903
        %v1905 = vpop.f32.mrb[0].mxu0
        %v1906 = vpop.f32.mrb[0].mxu0
        %v1907 = vadd.f32 0.0, %v1906
        %v1908 = vpop.f32.mrb[0].mxu0
        %1909 = vmatprep.mubr.bf16.mxu0 0
        %1910 = vmatmul.mubr.bf16.gmra.mrb[0].mxu0 %v1455
        %v1911 = vpop.f32.mrb[0].mxu0
        %v1912 = vadd.f32 0.0, %v1911
        %v1913 = vpop.f32.mrb[0].mxu0
        %v1914 = vpop.f32.mrb[0].mxu0
        %v1915 = vadd.f32 0.0, %v1914
        %v1916 = vpop.f32.mrb[0].mxu0
        %1917 = vmatprep.mubr.bf16.mxu0 0
        %1918 = vmatmul.mubr.bf16.gmra.mrb[0].mxu0 %v1457
        %v1919 = vpop.f32.mrb[0].mxu0
        %v1920 = vadd.f32 0.0, %v1919
        %v1921 = vpop.f32.mrb[0].mxu0
        %v1922 = vpop.f32.mrb[0].mxu0
        %v1923 = vadd.f32 0.0, %v1922
        %v1924 = vpop.f32.mrb[0].mxu0
        %1925 = vmatprep.mubr.bf16.mxu0 0
        %1926 = vmatmul.mubr.bf16.gmra.mrb[0].mxu0 %v1459
        %v1927 = vpop.f32.mrb[0].mxu0
        %v1928 = vadd.f32 0.0, %v1927
        %v1929 = vpop.f32.mrb[0].mxu0
        %v1930 = vpop.f32.mrb[0].mxu0
        %v1931 = vadd.f32 0.0, %v1930
        %v1932 = vpop.f32.mrb[0].mxu0
        %1933 = vmatprep.mubr.bf16.mxu0 0
        %1934 = vmatmul.mubr.bf16.gmra.mrb[0].mxu0 %v1461
        %v1935 = vpop.f32.mrb[0].mxu0
        %v1936 = vadd.f32 0.0, %v1935
        %v1937 = vpop.f32.mrb[0].mxu0
        %v1938 = vpop.f32.mrb[0].mxu0
        %v1939 = vadd.f32 0.0, %v1938
        %v1940 = vpop.f32.mrb[0].mxu0
        %1941 = vmatprep.mubr.bf16.mxu0 0
        %1942 = vmatmul.mubr.bf16.gmra.mrb[0].mxu0 %v1463
        %v1943 = vpop.f32.mrb[0].mxu0
        %v1944 = vadd.f32 0.0, %v1943
        %v1945 = vpop.f32.mrb[0].mxu0
        %v1946 = vpop.f32.mrb[0].mxu0
        %v1947 = vadd.f32 0.0, %v1946
        %v1948 = vpop.f32.mrb[0].mxu0
        %1949 = vmatprep.mubr.bf16.mxu0 0
        %1950 = vmatmul.mubr.bf16.gmra.mrb[0].mxu0 %v1465
        %v1951 = vpop.f32.mrb[0].mxu0
        %v1952 = vadd.f32 0.0, %v1951
        %v1953 = vpop.f32.mrb[0].mxu0
        %v1954 = vpop.f32.mrb[0].mxu0
        %v1955 = vadd.f32 0.0, %v1954
        %v1956 = vpop.f32.mrb[0].mxu0
        %1957 = vmatprep.mubr.bf16.mxu0 0
        %1958 = vmatmul.mubr.bf16.gmra.mrb[0].mxu0 %v1800
        %v1959 = vpop.f32.mrb[0].mxu0
        %v1960 = vadd.f32 0.0, %v1959
        %v1961 = vpop.f32.mrb[0].mxu0
        %v1962 = vpop.f32.mrb[0].mxu0
        %v1963 = vadd.f32 0.0, %v1962
        %v1964 = vpop.f32.mrb[0].mxu0
        %1965 = vdwg.mxu0
        %v1966 = vadd.f32 %v1672, %v1840
        %v1967 = vadd.f32 %v1675, %v1843
        %v1968 = vadd.f32 %v1680, %v1848
        %v1969 = vadd.f32 %v1683, %v1851
        %v1970 = vadd.f32 %v1688, %v1856
        %v1971 = vadd.f32 %v1691, %v1859
        %v1972 = vadd.f32 %v1696, %v1864
        %v1973 = vadd.f32 %v1699, %v1867
        %v1974 = vadd.f32 %v1704, %v1872
        %v1975 = vadd.f32 %v1707, %v1875
        %v1976 = vadd.f32 %v1712, %v1880
        %v1977 = vadd.f32 %v1715, %v1883
        %v1978 = vadd.f32 %v1720, %v1888
        %v1979 = vadd.f32 %v1723, %v1891
        %v1980 = vadd.f32 %v1728, %v1896
        %v1981 = vadd.f32 %v1731, %v1899
        %v1982 = vadd.f32 %v1736, %v1904
        %v1983 = vadd.f32 %v1739, %v1907
        %v1984 = vadd.f32 %v1744, %v1912
        %v1985 = vadd.f32 %v1747, %v1915
        %v1986 = vadd.f32 %v1752, %v1920
        %v1987 = vadd.f32 %v1755, %v1923
        %v1988 = vadd.f32 %v1760, %v1928
        %v1989 = vadd.f32 %v1763, %v1931
        %v1990 = vadd.f32 %v1768, %v1936
        %v1991 = vadd.f32 %v1771, %v1939
        %v1992 = vadd.f32 %v1776, %v1944
        %v1993 = vadd.f32 %v1779, %v1947
        %v1994 = vadd.f32 %v1784, %v1952
        %v1995 = vadd.f32 %v1787, %v1955
        %v1996 = vadd.f32 %v1792, %v1960
        %v1997 = vadd.f32 %v1795, %v1963
        %v1998 = vld [vmem:[#allocation13] sm:$0x1]
        %v2000 = vlaneseq
        %v2001 = vshrl.u32 %v2000, 7
        %v2002 = vsub.s32 0, %v2001
        %v2003 = vrot.slane %v1998, %v2002
        %v2005 = vadd.f32 %v1966, %v2003
        %v2006 = vadd.f32 %v1967, %v2003
        %v2007 = vadd.f32 %v1968, %v2003
        %v2008 = vadd.f32 %v1969, %v2003
        %v2009 = vadd.f32 %v1970, %v2003
        %v2010 = vadd.f32 %v1971, %v2003
        %v2011 = vadd.f32 %v1972, %v2003
        %v2012 = vadd.f32 %v1973, %v2003
        %v2013 = vadd.f32 %v1974, %v2003
        %v2014 = vadd.f32 %v1975, %v2003
        %v2015 = vadd.f32 %v1976, %v2003
        %v2016 = vadd.f32 %v1977, %v2003
        %v2017 = vadd.f32 %v1978, %v2003
        %v2018 = vadd.f32 %v1979, %v2003
        %v2019 = vadd.f32 %v1980, %v2003
        %v2020 = vadd.f32 %v1981, %v2003
        %v2021 = vadd.f32 %v1982, %v2003
        %v2022 = vadd.f32 %v1983, %v2003
        %v2023 = vadd.f32 %v1984, %v2003
        %v2024 = vadd.f32 %v1985, %v2003
        %v2025 = vadd.f32 %v1986, %v2003
        %v2026 = vadd.f32 %v1987, %v2003
        %v2027 = vadd.f32 %v1988, %v2003
        %v2028 = vadd.f32 %v1989, %v2003
        %v2029 = vadd.f32 %v1990, %v2003
        %v2030 = vadd.f32 %v1991, %v2003
        %v2031 = vadd.f32 %v1992, %v2003
        %v2032 = vadd.f32 %v1993, %v2003
        %v2033 = vadd.f32 %v1994, %v2003
        %v2034 = vadd.f32 %v1995, %v2003
        %v2035 = vadd.f32 %v1996, %v2003
        %v2036 = vadd.f32 %v1997, %v2003
        %v2037 = vmul.f32 %v2005, 0.1
        %v2038 = vmul.f32 %v2006, 0.1
        %v2039 = vmul.f32 %v2007, 0.1
        %v2040 = vmul.f32 %v2008, 0.1
        %v2041 = vmul.f32 %v2009, 0.1
        %v2042 = vmul.f32 %v2010, 0.1
        %v2043 = vmul.f32 %v2011, 0.1
        %v2044 = vmul.f32 %v2012, 0.1
        %v2045 = vmul.f32 %v2013, 0.1
        %v2046 = vmul.f32 %v2014, 0.1
        %v2047 = vmul.f32 %v2015, 0.1
        %v2048 = vmul.f32 %v2016, 0.1
        %v2049 = vmul.f32 %v2017, 0.1
        %v2050 = vmul.f32 %v2018, 0.1
        %v2051 = vmul.f32 %v2019, 0.1
        %v2052 = vmul.f32 %v2020, 0.1
        %v2053 = vmul.f32 %v2021, 0.1
        %v2054 = vmul.f32 %v2022, 0.1
        %v2055 = vmul.f32 %v2023, 0.1
        %v2056 = vmul.f32 %v2024, 0.1
        %v2057 = vmul.f32 %v2025, 0.1
        %v2058 = vmul.f32 %v2026, 0.1
        %v2059 = vmul.f32 %v2027, 0.1
        %v2060 = vmul.f32 %v2028, 0.1
        %v2061 = vmul.f32 %v2029, 0.1
        %v2062 = vmul.f32 %v2030, 0.1
        %v2063 = vmul.f32 %v2031, 0.1
        %v2064 = vmul.f32 %v2032, 0.1
        %v2065 = vmul.f32 %v2033, 0.1
        %v2066 = vmul.f32 %v2034, 0.1
        %v2067 = vmul.f32 %v2035, 0.1
        %v2068 = vmul.f32 %v2036, 0.1
        %v2069 = vmax.f32 %v2005, %v2037
        %v2070 = vmax.f32 %v2006, %v2038
        %v2071 = vmax.f32 %v2007, %v2039
        %v2072 = vmax.f32 %v2008, %v2040
        %v2073 = vmax.f32 %v2009, %v2041
        %v2074 = vmax.f32 %v2010, %v2042
        %v2075 = vmax.f32 %v2011, %v2043
        %v2076 = vmax.f32 %v2012, %v2044
        %v2077 = vmax.f32 %v2013, %v2045
        %v2078 = vmax.f32 %v2014, %v2046
        %v2079 = vmax.f32 %v2015, %v2047
        %v2080 = vmax.f32 %v2016, %v2048
        %v2081 = vmax.f32 %v2017, %v2049
        %v2082 = vmax.f32 %v2018, %v2050
        %v2083 = vmax.f32 %v2019, %v2051
        %v2084 = vmax.f32 %v2020, %v2052
        %v2085 = vmax.f32 %v2021, %v2053
        %v2086 = vmax.f32 %v2022, %v2054
        %v2087 = vmax.f32 %v2023, %v2055
        %v2088 = vmax.f32 %v2024, %v2056
        %v2089 = vmax.f32 %v2025, %v2057
        %v2090 = vmax.f32 %v2026, %v2058
        %v2091 = vmax.f32 %v2027, %v2059
        %v2092 = vmax.f32 %v2028, %v2060
        %v2093 = vmax.f32 %v2029, %v2061
        %v2094 = vmax.f32 %v2030, %v2062
        %v2095 = vmax.f32 %v2031, %v2063
        %v2096 = vmax.f32 %v2032, %v2064
        %v2097 = vmax.f32 %v2033, %v2065
        %v2098 = vmax.f32 %v2034, %v2066
        %v2099 = vmax.f32 %v2035, %v2067
        %v2100 = vmax.f32 %v2036, %v2068
        %v2101 = vunpack.c.l.bf16 %v457
        %v2102 = vunpack.c.l.bf16 %v458
        %v2103 = vunpack.c.l.bf16 %v459
        %v2104 = vunpack.c.l.bf16 %v460
        %v2105 = vunpack.c.l.bf16 %v461
        %v2106 = vunpack.c.l.bf16 %v462
        %v2107 = vunpack.c.l.bf16 %v463
        %v2108 = vunpack.c.l.bf16 %v464
        %v2109 = vunpack.c.l.bf16 %v465
        %v2110 = vunpack.c.l.bf16 %v466
        %v2111 = vunpack.c.l.bf16 %v467
        %v2112 = vunpack.c.l.bf16 %v468
        %v2113 = vunpack.c.l.bf16 %v469
        %v2114 = vunpack.c.l.bf16 %v470
        %v2115 = vunpack.c.l.bf16 %v471
        %v2116 = vunpack.c.l.bf16 %v472
        %v2117 = vunpack.c.l.bf16 %v473
        %v2118 = vunpack.c.l.bf16 %v474
        %v2119 = vunpack.c.l.bf16 %v475
        %v2120 = vunpack.c.l.bf16 %v476
        %v2121 = vunpack.c.l.bf16 %v477
        %v2122 = vunpack.c.l.bf16 %v478
        %v2123 = vunpack.c.l.bf16 %v479
        %v2124 = vunpack.c.l.bf16 %v480
        %v2125 = vunpack.c.l.bf16 %v481
        %v2126 = vunpack.c.l.bf16 %v482
        %v2127 = vunpack.c.l.bf16 %v483
        %v2128 = vunpack.c.l.bf16 %v484
        %v2129 = vunpack.c.l.bf16 %v485
        %v2130 = vunpack.c.l.bf16 %v486
        %v2131 = vunpack.c.l.bf16 %v487
        %v2132 = vunpack.c.l.bf16 %v488
        %v2133 = vadd.f32 %v2069, %v2101
        %v2134 = vadd.f32 %v2070, %v2102
        %v2135 = vadd.f32 %v2071, %v2103
        %v2136 = vadd.f32 %v2072, %v2104
        %v2137 = vadd.f32 %v2073, %v2105
        %v2138 = vadd.f32 %v2074, %v2106
        %v2139 = vadd.f32 %v2075, %v2107
        %v2140 = vadd.f32 %v2076, %v2108
        %v2141 = vadd.f32 %v2077, %v2109
        %v2142 = vadd.f32 %v2078, %v2110
        %v2143 = vadd.f32 %v2079, %v2111
        %v2144 = vadd.f32 %v2080, %v2112
        %v2145 = vadd.f32 %v2081, %v2113
        %v2146 = vadd.f32 %v2082, %v2114
        %v2147 = vadd.f32 %v2083, %v2115
        %v2148 = vadd.f32 %v2084, %v2116
        %v2149 = vadd.f32 %v2085, %v2117
        %v2150 = vadd.f32 %v2086, %v2118
        %v2151 = vadd.f32 %v2087, %v2119
        %v2152 = vadd.f32 %v2088, %v2120
        %v2153 = vadd.f32 %v2089, %v2121
        %v2154 = vadd.f32 %v2090, %v2122
        %v2155 = vadd.f32 %v2091, %v2123
        %v2156 = vadd.f32 %v2092, %v2124
        %v2157 = vadd.f32 %v2093, %v2125
        %v2158 = vadd.f32 %v2094, %v2126
        %v2159 = vadd.f32 %v2095, %v2127
        %v2160 = vadd.f32 %v2096, %v2128
        %v2161 = vadd.f32 %v2097, %v2129
        %v2162 = vadd.f32 %v2098, %v2130
        %v2163 = vadd.f32 %v2099, %v2131
        %v2164 = vadd.f32 %v2100, %v2132
        %v2165 = vpack.c.bf16 %v2134, %v2133
        %v2166 = vpack.c.bf16 %v2136, %v2135
        %v2167 = vpack.c.bf16 %v2138, %v2137
        %v2168 = vpack.c.bf16 %v2140, %v2139
        %v2169 = vpack.c.bf16 %v2142, %v2141
        %v2170 = vpack.c.bf16 %v2144, %v2143
        %v2171 = vpack.c.bf16 %v2146, %v2145
        %v2172 = vpack.c.bf16 %v2148, %v2147
        %v2173 = vpack.c.bf16 %v2150, %v2149
        %v2174 = vpack.c.bf16 %v2152, %v2151
        %v2175 = vpack.c.bf16 %v2154, %v2153
        %v2176 = vpack.c.bf16 %v2156, %v2155
        %v2177 = vpack.c.bf16 %v2158, %v2157
        %v2178 = vpack.c.bf16 %v2160, %v2159
        %v2179 = vpack.c.bf16 %v2162, %v2161
        %v2180 = vpack.c.bf16 %v2164, %v2163
        %v2197 = vunpack.c.l.b16 %v2165
        %v2198 = vunpack.c.h.b16 %v2165
        %v2199 = vunpack.c.l.b16 %v2166
        %v2200 = vunpack.c.h.b16 %v2166
        %v2201 = vunpack.c.l.b16 %v2167
        %v2202 = vunpack.c.h.b16 %v2167
        %v2203 = vunpack.c.l.b16 %v2168
        %v2204 = vunpack.c.h.b16 %v2168
        %v2205 = vunpack.c.l.b16 %v2169
        %v2206 = vunpack.c.h.b16 %v2169
        %v2207 = vunpack.c.l.b16 %v2170
        %v2208 = vunpack.c.h.b16 %v2170
        %v2209 = vunpack.c.l.b16 %v2171
        %v2210 = vunpack.c.h.b16 %v2171
        %v2211 = vunpack.c.l.b16 %v2172
        %v2212 = vunpack.c.h.b16 %v2172
        %v2213 = vunpack.c.l.b16 %v2173
        %v2214 = vunpack.c.h.b16 %v2173
        %v2215 = vunpack.c.l.b16 %v2174
        %v2216 = vunpack.c.h.b16 %v2174
        %v2217 = vunpack.c.l.b16 %v2175
        %v2218 = vunpack.c.h.b16 %v2175
        %v2219 = vunpack.c.l.b16 %v2176
        %v2220 = vunpack.c.h.b16 %v2176
        %v2221 = vunpack.c.l.b16 %v2177
        %v2222 = vunpack.c.h.b16 %v2177
        %v2223 = vunpack.c.l.b16 %v2178
        %v2224 = vunpack.c.h.b16 %v2178
        %v2225 = vunpack.c.l.b16 %v2179
        %v2226 = vunpack.c.h.b16 %v2179
        %v2227 = vunpack.c.l.b16 %v2180
        %v2228 = vunpack.c.h.b16 %v2180
        %v2229 = vpack.c.b16 %v2197, %v2197
        %v2230 = vpack.c.b16 %v2198, %v2198
        %v2231 = vpack.c.b16 %v2199, %v2199
        %v2232 = vpack.c.b16 %v2200, %v2200
        %v2233 = vpack.c.b16 %v2201, %v2201
        %v2234 = vpack.c.b16 %v2202, %v2202
        %v2235 = vpack.c.b16 %v2203, %v2203
        %v2236 = vpack.c.b16 %v2204, %v2204
        %v2237 = vpack.c.b16 %v2205, %v2205
        %v2238 = vpack.c.b16 %v2206, %v2206
        %v2239 = vpack.c.b16 %v2207, %v2207
        %v2240 = vpack.c.b16 %v2208, %v2208
        %v2241 = vpack.c.b16 %v2209, %v2209
        %v2242 = vpack.c.b16 %v2210, %v2210
        %v2243 = vpack.c.b16 %v2211, %v2211
        %v2244 = vpack.c.b16 %v2212, %v2212
        %v2245 = vpack.c.b16 %v2213, %v2213
        %v2246 = vpack.c.b16 %v2214, %v2214
        %v2247 = vpack.c.b16 %v2215, %v2215
        %v2248 = vpack.c.b16 %v2216, %v2216
        %v2249 = vpack.c.b16 %v2217, %v2217
        %v2250 = vpack.c.b16 %v2218, %v2218
        %v2251 = vpack.c.b16 %v2219, %v2219
        %v2252 = vpack.c.b16 %v2220, %v2220
        %v2253 = vpack.c.b16 %v2221, %v2221
        %v2254 = vpack.c.b16 %v2222, %v2222
        %v2255 = vpack.c.b16 %v2223, %v2223
        %v2256 = vpack.c.b16 %v2224, %v2224
        %v2257 = vpack.c.b16 %v2225, %v2225
        %v2258 = vpack.c.b16 %v2226, %v2226
        %v2259 = vpack.c.b16 %v2227, %v2227
        %v2260 = vpack.c.b16 %v2228, %v2228
        %vm2293 = vcmask 27648
        %2294 = vst.msk [vmem:[%s452] sm:$0xf] %vm2293, %v2229
        %2295 = vst.msk [vmem:[%s452 + $0x4] sm:$0xf] %vm2293, %v2230
        %2296 = vst.msk [vmem:[%s452 + $0x8] sm:$0xf] %vm2293, %v2231
        %2297 = vst.msk [vmem:[%s452 + $0xc] sm:$0xf] %vm2293, %v2232
        %2298 = vst.msk [vmem:[%s452 + $0x10] sm:$0xf] %vm2293, %v2233
        %2299 = vst.msk [vmem:[%s452 + $0x14] sm:$0xf] %vm2293, %v2234
        %2300 = vst.msk [vmem:[%s452 + $0x18] sm:$0xf] %vm2293, %v2235
        %2301 = vst.msk [vmem:[%s452 + $0x1c] sm:$0xf] %vm2293, %v2236
        %2302 = vst.msk [vmem:[%s452 + $0x20] sm:$0xf] %vm2293, %v2237
        %2303 = vst.msk [vmem:[%s452 + $0x24] sm:$0xf] %vm2293, %v2238
        %2304 = vst.msk [vmem:[%s452 + $0x28] sm:$0xf] %vm2293, %v2239
        %2305 = vst.msk [vmem:[%s452 + $0x2c] sm:$0xf] %vm2293, %v2240
        %2306 = vst.msk [vmem:[%s452 + $0x30] sm:$0xf] %vm2293, %v2241
        %2307 = vst.msk [vmem:[%s452 + $0x34] sm:$0xf] %vm2293, %v2242
        %2308 = vst.msk [vmem:[%s452 + $0x38] sm:$0xf] %vm2293, %v2243
        %2309 = vst.msk [vmem:[%s452 + $0x3c] sm:$0xf] %vm2293, %v2244
        %2310 = vst.msk [vmem:[%s452 + $0x40] sm:$0xf] %vm2293, %v2245
        %2311 = vst.msk [vmem:[%s452 + $0x44] sm:$0xf] %vm2293, %v2246
        %2312 = vst.msk [vmem:[%s452 + $0x48] sm:$0xf] %vm2293, %v2247
        %2313 = vst.msk [vmem:[%s452 + $0x4c] sm:$0xf] %vm2293, %v2248
        %2314 = vst.msk [vmem:[%s452 + $0x50] sm:$0xf] %vm2293, %v2249
        %2315 = vst.msk [vmem:[%s452 + $0x54] sm:$0xf] %vm2293, %v2250
        %2316 = vst.msk [vmem:[%s452 + $0x58] sm:$0xf] %vm2293, %v2251
        %2317 = vst.msk [vmem:[%s452 + $0x5c] sm:$0xf] %vm2293, %v2252
        %2318 = vst.msk [vmem:[%s452 + $0x60] sm:$0xf] %vm2293, %v2253
        %2319 = vst.msk [vmem:[%s452 + $0x64] sm:$0xf] %vm2293, %v2254
        %2320 = vst.msk [vmem:[%s452 + $0x68] sm:$0xf] %vm2293, %v2255
        %2321 = vst.msk [vmem:[%s452 + $0x6c] sm:$0xf] %vm2293, %v2256
        %2322 = vst.msk [vmem:[%s452 + $0x70] sm:$0xf] %vm2293, %v2257
        %2323 = vst.msk [vmem:[%s452 + $0x74] sm:$0xf] %vm2293, %v2258
        %2324 = vst.msk [vmem:[%s452 + $0x78] sm:$0xf] %vm2293, %v2259
        %2325 = vst.msk [vmem:[%s452 + $0x7c] sm:$0xf] %vm2293, %v2260
        %s2326 = sand.u32 %s219, 1
        %s2327 = scalar_lea.sflag [#allocation4], %s2326
        %s2328 = sand.u32 %s219, 1
        %s2329 = smul.addr %s2328, 128
        %s2330 = scalar_lea.vmem [#allocation14], %s2329
        // Predicated region
        $region77: #{residual_block.2} parent=47 // pred_check
          %p2331 = pneg %p229
        $region78: #{residual_block.2} parent=47 // pred_check_branch
          %2333 = sbr.rel (%p2331) target = $region80
        $region79: #{residual_block.2} parent=47 // pred_region
          %s2334 = smul.u32 16, %s34
          %s2336 = ssub.s32 2048, 2048
          %2337 = vsyncadd %s2327, %s2336
          %s2338 = smul.addr %s2334, 2
          %s2339 = smul.addr %s33, 32
          %s2340 = sadd.s32 %s2338, %s2339
          %s2341 = smul.addr %s2340, 64
          %s2342 = scalar_lea.hbm %s7, %s2341
          %s2343 = sshll.u32 %s2330, 4
          %s2344 = int_to_ptr.vmem [resolvable:$true] %s2343
          %2349 = dma.vmem_to_hbm [thread:$0]  %s2344, 2048, %s2342, %s2327, 64, 64, 4
        $region80: #{residual_block.2} parent=47 // pred_fallthru
          _
      $region48: #{residual_block.2} parent=5 // pred_fallthru
        _
      %p2350 = scmp.le.s32.totalorder 2, %s24
      // Predicated region
      $region81: #{residual_block.2} parent=5 // pred_check
        %p2351 = pneg %p2350
      $region82: #{residual_block.2} parent=5 // pred_check_branch
        %2353 = sbr.rel (%p2351) target = $region84
      $region83: #{residual_block.2} parent=5 // pred_region
        %s2354 = ssub.s32 %s24, 2
        // Predicated region
        $region85: #{residual_block.2} parent=83 // pred_check
          %p2355 = pneg %p235
        $region86: #{residual_block.2} parent=83 // pred_check_branch
          %2357 = sbr.rel (%p2355) target = $region88
        $region87: #{residual_block.2} parent=83 // pred_region
          %s2358 = sand.u32 %s220, 1
          %s2359 = scalar_lea.sflag [#allocation4], %s2358
          %s2360 = sand.u32 %s220, 1
          %s2361 = smul.addr %s2360, 128
          %s2362 = scalar_lea.vmem [#allocation14], %s2361
          %2363 = dma.done %s2359, 2048
        $region88: #{residual_block.2} parent=83 // pred_fallthru
          _
      $region84: #{residual_block.2} parent=5 // pred_fallthru
        _
    $region6: #{residual_block.2} parent=1 // loop_footer
      %s28 = sadd.s32 1, %s24
    $region7: #{residual_block.2} parent=1 // loop_footer_branch
      %23 = sbr.rel target = $region3
    $region8: #{residual_block.2} parent=1 // loop_exit
      _
    %2364 = vsyncpa [#allocation3], 1
    %s2365 = scalar_lea.sflag [#allocation3], 1
    %2366 = vsyncpa %s2365, 1
    %2367 = vsyncpa [#allocation6], 1
    %s2368 = scalar_lea.sflag [#allocation6], 1
    %2369 = vsyncpa %s2368, 1
    %2370 = vsyncpa [#allocation9], 1
    %2371 = vsyncpa [#allocation12], 1
    %2372 = vsyncpa [#allocation4], 1
    %s2373 = scalar_lea.sflag [#allocation4], 1
    %2374 = vsyncpa %s2373, 1

</llo_original>
